<compile_context>
chip_gen: v5e
topology: v5e:2x2
jax: 0.10.0
libtpu: 0.0.40
codegen_flags: <defaults>
</compile_context>

<pallas_src>
import math
import numpy as np
import jax
import jax.numpy as jnp
from jax.experimental import pallas as pl
from jax.experimental.pallas import tpu as pltpu

# ------------------------- model hyper-parameters ---------------------------
B = 2           # batch
S = 10          # full token sequence (bos ... eos); head sees L = S - 2
L = S - 2       # cropped sequence length
E = 32          # hidden_embedding (encoder output dim)
C = 8           # in_channels (after reductio_module Linear)
M = 16          # main_planes
VOCAB = 16
STRIDES = (2, 1, 2, 1, 2, 1)   # UtrResBlock strides inside the predictor
BN_EPS = 1e-5

# ---------------------- lane-dense slab cell layout --------------------------
CELL = 16                      # each cell is 16 rows x 16 lanes
NLG = 8                        # lane groups per row group (8 * 16 = 128 lanes)
W_COLS = NLG * CELL            # 128
V_ROWS, V_COLS = 8, 128        # vector slab = one vreg


def _cell_rc(idx):
    """(row, lane) offset of 16x16 cell `idx` inside the weight slab."""
    return (idx // NLG) * CELL, (idx % NLG) * CELL


def _build_layout():
    """Static cell assignment + compile-time constant gather/pool matrices."""
    layout = {}
    gathers = {}   # (lin, lout, stride, off) -> ('zero'|'id'|'mat', cell or None)
    gmats = {}     # cell -> numpy constant matrix
    next_cell = [0]

    def alloc():
        c = next_cell[0]
        next_cell[0] += 1
        return c

    layout["stem"] = [alloc() for _ in range(3)]                 # taps -1,0,+1
    layout["res"] = [[alloc() for _ in range(3)] for _ in range(12)]
    layout["ds"] = [alloc() for _ in range(3)]

    def add_gathers(lin, stride):
        lout = (lin - 1) // stride + 1
        for off in (-1, 0, 1):
            key = (lin, lout, stride, off)
            if key in gathers:
                continue
            G = np.zeros((B * lout, B * lin), np.float32)
            for b in range(B):
                for j in range(lout):
                    src = stride * j + off
                    if 0 <= src < lin:
                        G[b * lout + j, b * lin + src] = 1.0
            if not G.any():
                gathers[key] = ("zero", None)                    # tap fully in padding
            elif lout == lin and np.array_equal(G, np.eye(B * lin, dtype=np.float32)):
                gathers[key] = ("id", None)                      # stride-1 centre tap
            else:
                cell = alloc()
                gathers[key] = ("mat", cell)
                gmats[cell] = G
        return lout

    add_gathers(L, 1)                                            # stem conv
    lc = L
    for s in STRIDES:
        ln = add_gathers(lc, s)                                  # conv1 (+ downsample centre)
        add_gathers(ln, 1)                                       # conv2
        lc = ln
    layout["lfin"] = lc

    if lc > 1:                                                   # dead for these hyperparams
        pcell = alloc()
        P = np.zeros((B, B * lc), np.float32)
        for b in range(B):
            P[b, b * lc:(b + 1) * lc] = 1.0 / lc
        gmats[pcell] = P
        layout["pool"] = (pcell, B, B * lc)
    else:
        layout["pool"] = None

    n_rowgroups = -(-next_cell[0] // NLG)
    layout["wred_row"] = n_rowgroups * CELL                      # (E, C) block below the cells
    layout["w_rows"] = layout["wred_row"] + E
    layout["gathers"] = gathers
    layout["gmats"] = gmats
    return layout


_LAYOUT = _build_layout()
W_ROWS = _LAYOUT["w_rows"]     # 144 for these hyperparams

# vector-slab cell indices (row = idx // 8, lanes = (idx % 8) * 16)
VBSTEM = 0
VS1 = 1        # + blk (6 rows of folded bn1 scale)
VB1 = 7        # + blk (6 rows of folded bn1 shift)
VB2 = 13       # + blk (6 rows of folded bn2 shift; bn2 scale folded into conv1)
VDSB = 19      # + i   (3 rows of downsample folded-BN shift)
VBRED = 22
VWFIN = 23
VBFIN = 24


# --------------------------------- kernel -----------------------------------
def _choose_model_kernel(x_ref, w_ref, v_ref, out_ref):
    f32 = jnp.float32
    gathers = _LAYOUT["gathers"]

    def wcell(cell, rows=M, cols=M):
        r, c = _cell_rc(cell)
        return w_ref[r:r + rows, c:c + cols]

    def vrow(idx, width=M):
        r, c = idx // NLG, (idx % NLG) * CELL
        return v_ref[r:r + 1, c:c + width]

    def conv_k3(h, cells, lin, stride, cin):
        """Conv1d(k=3, padding=1, stride) on a (B*lin, cin) slab.

        3 accumulating dots, one per tap; tap gathers are precomputed constant
        0/1 matrices loaded from the weight slab (no runtime construction)."""
        lout = (lin - 1) // stride + 1
        acc = None
        for t, off in enumerate((-1, 0, 1)):
            kind, gcell = gathers[(lin, lout, stride, off)]
            if kind == "zero":
                continue                                          # tap sees only padding
            if kind == "id":
                hg = h
            else:
                hg = jnp.dot(wcell(gcell, rows=B * lout, cols=B * lin), h,
                             preferred_element_type=f32)
            part = jnp.dot(hg, wcell(cells[t], rows=cin), preferred_element_type=f32)
            acc = part if acc is None else acc + part
        return acc

    x = x_ref[...]                                                # (B*L, E), pre-masked

    # reductio_module: Linear(E -> C)  (transpose(1,2) == channels-last layout)
    wred = w_ref[_LAYOUT["wred_row"]:_LAYOUT["wred_row"] + E, 0:C]
    h = jnp.dot(x, wred, preferred_element_type=f32) + vrow(VBRED, C)   # (B*L, C)

    # predictor stem: Conv1d(C -> M, k=3, padding=1) + bias
    h = conv_k3(h, _LAYOUT["stem"], L, 1, C) + vrow(VBSTEM)             # (B*L, M)

    # 6 UtrResBlocks (bn1-relu-conv1-bn2-relu-conv2 + shortcut)
    lcur = L
    ds_i = 0
    for blk, stride in enumerate(STRIDES):
        lnext = (lcur - 1) // stride + 1

        out = jnp.maximum(h * vrow(VS1 + blk) + vrow(VB1 + blk), 0.0)   # bn1 + relu1
        out = conv_k3(out, _LAYOUT["res"][2 * blk], lcur, stride, M)    # conv1 (bn2 scale folded)
        out = jnp.maximum(out + vrow(VB2 + blk), 0.0)                   # bn2 shift + relu2
        out = conv_k3(out, _LAYOUT["res"][2 * blk + 1], lnext, 1, M)    # conv2

        if stride > 1:
            # downsample: Conv1d(k=1, stride=2, bias=False) + BN, applied to the
            # raw block input h (matches PyTorch: identity = downsample(x)).
            _, gcell = gathers[(lcur, lnext, stride, 0)]
            sub = jnp.dot(wcell(gcell, rows=B * lnext, cols=B * lcur), h,
                          preferred_element_type=f32)
            identity = jnp.dot(sub, wcell(_LAYOUT["ds"][ds_i]),
                               preferred_element_type=f32) + vrow(VDSB + ds_i)
            ds_i += 1
        else:
            identity = h

        h = out + identity
        lcur = lnext

    # AdaptiveAvgPool1d(1) + Flatten (final length is 1 for these hyperparams)
    if _LAYOUT["pool"] is None:
        pooled = h                                                      # (B, M)
    else:
        pcell, pr, pc = _LAYOUT["pool"]
        pooled = jnp.dot(wcell(pcell, rows=pr, cols=pc), h, preferred_element_type=f32)

    # Dropout (eval: identity) + Linear(M -> 1) as VPU multiply + lane reduce
    y = jnp.sum(pooled * vrow(VWFIN), axis=-1, keepdims=True) + vrow(VBFIN, 1)
    out_ref[...] = y.astype(out_ref.dtype)                              # (B, 1)


# --------------------------- parameter construction -------------------------
def init_params(key):
    ks = jax.random.split(key, 6)
    p = {}
    # stand-in encoder embedding table (see TODO in forward)
    p["enc_emb"] = 0.02 * jax.random.normal(ks[0], (VOCAB, E), jnp.float32)
    # reductio_module Linear(E -> C): normal(std=0.001), bias 0
    p["wred"] = 0.001 * jax.random.normal(ks[1], (E, C), jnp.float32)
    p["bred"] = jnp.zeros((C,), jnp.float32)
    # stem Conv1d(C -> M, k=3): kaiming_normal fan_in = 3*C, bias zeroed
    p["wstem"] = math.sqrt(2.0 / (3 * C)) * jax.random.normal(ks[2], (3, C, M), jnp.float32)
    p["bstem"] = jnp.zeros((M,), jnp.float32)
    # resblock conv weights: 12 convs x 3 taps x (Cin=M, Cout=M), kaiming fan_in = 3*M
    p["rw"] = math.sqrt(2.0 / (3 * M)) * jax.random.normal(ks[3], (12, 3, M, M), jnp.float32)
    # BatchNorm1d raw params (PyTorch init: gamma=1, beta=0, mean=0, var=1)
    p["bn_gamma"] = jnp.ones((12, M), jnp.float32)
    p["bn_beta"] = jnp.zeros((12, M), jnp.float32)
    p["bn_mean"] = jnp.zeros((12, M), jnp.float32)
    p["bn_var"] = jnp.ones((12, M), jnp.float32)
    # downsample convs (stride-2 blocks only): Conv1d k=1, kaiming fan_in = M
    p["dsw"] = math.sqrt(2.0 / M) * jax.random.normal(ks[4], (3, M, M), jnp.float32)
    p["ds_gamma"] = jnp.ones((3, M), jnp.float32)
    p["ds_beta"] = jnp.zeros((3, M), jnp.float32)
    p["ds_mean"] = jnp.zeros((3, M), jnp.float32)
    p["ds_var"] = jnp.ones((3, M), jnp.float32)
    # final Linear(M -> 1): normal(std=0.001), bias 0
    p["wfin"] = 0.001 * jax.random.normal(ks[5], (M, 1), jnp.float32)
    p["bfin"] = jnp.zeros((1,), jnp.float32)
    return p


def pack_params(p):
    """One-time host-side (numpy) BN folding + packing into the two slabs."""
    g = {k: np.asarray(v, dtype=np.float32) for k, v in p.items()}
    bn_s = g["bn_gamma"] / np.sqrt(g["bn_var"] + BN_EPS)                 # (12, M)
    bn_b = g["bn_beta"] - g["bn_mean"] * bn_s                            # (12, M)
    ds_s = g["ds_gamma"] / np.sqrt(g["ds_var"] + BN_EPS)                 # (3, M)
    ds_b = g["ds_beta"] - g["ds_mean"] * ds_s                            # (3, M)
    dsw_f = g["dsw"] * ds_s[:, None, :]                                  # fold BN scale into 1x1 conv

    wslab = np.zeros((W_ROWS, W_COLS), np.float32)

    def put_w(cell, mat):
        r, c = _cell_rc(cell)
        wslab[r:r + mat.shape[0], c:c + mat.shape[1]] = mat

    for t in range(3):
        put_w(_LAYOUT["stem"][t], g["wstem"][t])                         # (C, M)
    for conv in range(12):
        w = g["rw"][conv]                                                # (3, M, M)
        if conv % 2 == 0:                                                # conv1: fold bn2 scale
            w = w * bn_s[conv + 1][None, None, :]
        for t in range(3):
            put_w(_LAYOUT["res"][conv][t], w[t])
    for i in range(3):
        put_w(_LAYOUT["ds"][i], dsw_f[i])
    for cell, G in _LAYOUT["gmats"].items():                             # constant gathers / pool
        put_w(cell, G)
    wslab[_LAYOUT["wred_row"]:_LAYOUT["wred_row"] + E, 0:C] = g["wred"]

    vslab = np.zeros((V_ROWS, V_COLS), np.float32)

    def put_v(idx, vec):
        r, c = idx // NLG, (idx % NLG) * CELL
        vslab[r, c:c + vec.shape[0]] = vec

    put_v(VBSTEM, g["bstem"])
    for blk in range(6):
        put_v(VS1 + blk, bn_s[2 * blk])
        put_v(VB1 + blk, bn_b[2 * blk])
        put_v(VB2 + blk, bn_b[2 * blk + 1])
    for i in range(3):
        put_v(VDSB + i, ds_b[i])
    put_v(VBRED, g["bred"])
    put_v(VWFIN, g["wfin"][:, 0])
    put_v(VBFIN, g["bfin"])
    return jnp.asarray(wslab), jnp.asarray(vslab)


# --------------------------------- wrapper ----------------------------------
@jax.jit
def choose_model_forward(tokens, twod_input, enc_emb, wslab, vslab):
    # TODO(synk): the external `sentence_encoder` (a transformer returning
    # out_dict['inner_states']) is not available; a deterministic embedding
    # lookup stands in for its last inner state of shape (S, B, E).
    del twod_input  # consumed only by the (unavailable) encoder
    inner = enc_emb[tokens]                                              # (B, S, E)
    x = inner[:, 1:-1, :].astype(jnp.float32)                            # (B, L, E)

    # utr_regression masking: zero rows where token is pad (1) or eos (2)
    tok_inner = tokens[:, 1:-1]
    mask = jnp.logical_or(tok_inner == 1, tok_inner == 2)                # (B, L)
    x = jnp.where(mask[..., None], 0.0, x)
    x2d = x.reshape(B * L, E)                                            # batch folded into rows

    return pl.pallas_call(
        _choose_model_kernel,
        out_shape=jax.ShapeDtypeStruct((B, 1), jnp.float32),
        in_specs=[pl.BlockSpec(memory_space=pltpu.MemorySpace.VMEM)] * 3,
        out_specs=pl.BlockSpec(memory_space=pltpu.MemorySpace.VMEM),
    )(x2d, wslab, vslab)


if __name__ == "__main__":
    key = jax.random.PRNGKey(0)
    kp, kt = jax.random.split(key)
    params = init_params(kp)
    wslab, vslab = pack_params(params)   # hoisted out of the per-call jit (one-time pack)

    tokens = jax.random.randint(kt, (B, S), 3, VOCAB, dtype=jnp.int32)
    tokens = tokens.at[:, 0].set(0)      # bos (stripped by x[:, 1:-1])
    tokens = tokens.at[:, -1].set(2)     # final token (stripped by x[:, 1:-1])
    tokens = tokens.at[0, -2].set(2)     # eos inside the cropped window
    tokens = tokens.at[0, -3].set(1)     # pad inside the cropped window (exercises masking)
    twod_input = jnp.zeros((B, S, S), jnp.float32)   # consumed only by encoder stand-in

    out = choose_model_forward(tokens, twod_input, params["enc_emb"], wslab, vslab)
    out = jax.block_until_ready(out)
    assert out.shape == (B, 1) and out.dtype == jnp.float32
    assert bool(jnp.all(jnp.isfinite(out)))
    print("KERNEL_OK")
</pallas_src>

<mosaic_0001>
module attributes {stable_mosaic.version = 11 : i64} {
  func.func @_choose_model_kernel(%arg0: memref<16x32xf32, #tpu.memory_space<vmem>>, %arg1: memref<144x128xf32, #tpu.memory_space<vmem>>, %arg2: memref<8x128xf32, #tpu.memory_space<vmem>>, %arg3: memref<2x1xf32, #tpu.memory_space<vmem>>) attributes {dimension_semantics = [], scalar_prefetch = 0 : i64, scratch_operands = 0 : i64, tpu.core_type = #tpu.core_type<tc>} {
    %c0 = arith.constant 0 : index
    %c0_0 = arith.constant 0 : index
    %0 = vector.load %arg0[%c0, %c0_0] : memref<16x32xf32, #tpu.memory_space<vmem>>, vector<16x32xf32>
    %c112 = arith.constant 112 : index
    %c0_1 = arith.constant 0 : index
    %1 = vector.load %arg1[%c112, %c0_1] : memref<144x128xf32, #tpu.memory_space<vmem>>, vector<32x8xf32>
    %cst = arith.constant dense<0.000000e+00> : vector<16x8xf32>
    %2 = tpu.matmul %0, %1, %cst {dimension_numbers = #tpu.dot_dimension_numbers<[1], [0], [0], [1], [0, 0, 1, 1], [], []>} : vector<16x32xf32>, vector<32x8xf32>, vector<16x8xf32> -> vector<16x8xf32>
    %c2 = arith.constant 2 : index
    %c96 = arith.constant 96 : index
    %3 = vector.load %arg2[%c2, %c96] : memref<8x128xf32, #tpu.memory_space<vmem>>, vector<1x8xf32>
    %4 = vector.broadcast %3 : vector<1x8xf32> to vector<16x8xf32>
    %5 = arith.addf %2, %4 : vector<16x8xf32>
    %c80 = arith.constant 80 : index
    %c32 = arith.constant 32 : index
    %6 = vector.load %arg1[%c80, %c32] : memref<144x128xf32, #tpu.memory_space<vmem>>, vector<16x16xf32>
    %cst_2 = arith.constant dense<0.000000e+00> : vector<16x8xf32>
    %7 = tpu.matmul %6, %5, %cst_2 {dimension_numbers = #tpu.dot_dimension_numbers<[1], [0], [0], [1], [0, 0, 1, 1], [], []>} : vector<16x16xf32>, vector<16x8xf32>, vector<16x8xf32> -> vector<16x8xf32>
    %c0_3 = arith.constant 0 : index
    %c0_4 = arith.constant 0 : index
    %8 = vector.load %arg1[%c0_3, %c0_4] : memref<144x128xf32, #tpu.memory_space<vmem>>, vector<8x16xf32>
    %cst_5 = arith.constant dense<0.000000e+00> : vector<16x16xf32>
    %9 = tpu.matmul %7, %8, %cst_5 {dimension_numbers = #tpu.dot_dimension_numbers<[1], [0], [0], [1], [0, 0, 1, 1], [], []>} : vector<16x8xf32>, vector<8x16xf32>, vector<16x16xf32> -> vector<16x16xf32>
    %c0_6 = arith.constant 0 : index
    %c16 = arith.constant 16 : index
    %10 = vector.load %arg1[%c0_6, %c16] : memref<144x128xf32, #tpu.memory_space<vmem>>, vector<8x16xf32>
    %cst_7 = arith.constant dense<0.000000e+00> : vector<16x16xf32>
    %11 = tpu.matmul %5, %10, %cst_7 {dimension_numbers = #tpu.dot_dimension_numbers<[1], [0], [0], [1], [0, 0, 1, 1], [], []>} : vector<16x8xf32>, vector<8x16xf32>, vector<16x16xf32> -> vector<16x16xf32>
    %12 = arith.addf %9, %11 : vector<16x16xf32>
    %c80_8 = arith.constant 80 : index
    %c48 = arith.constant 48 : index
    %13 = vector.load %arg1[%c80_8, %c48] : memref<144x128xf32, #tpu.memory_space<vmem>>, vector<16x16xf32>
    %cst_9 = arith.constant dense<0.000000e+00> : vector<16x8xf32>
    %14 = tpu.matmul %13, %5, %cst_9 {dimension_numbers = #tpu.dot_dimension_numbers<[1], [0], [0], [1], [0, 0, 1, 1], [], []>} : vector<16x16xf32>, vector<16x8xf32>, vector<16x8xf32> -> vector<16x8xf32>
    %c0_10 = arith.constant 0 : index
    %c32_11 = arith.constant 32 : index
    %15 = vector.load %arg1[%c0_10, %c32_11] : memref<144x128xf32, #tpu.memory_space<vmem>>, vector<8x16xf32>
    %cst_12 = arith.constant dense<0.000000e+00> : vector<16x16xf32>
    %16 = tpu.matmul %14, %15, %cst_12 {dimension_numbers = #tpu.dot_dimension_numbers<[1], [0], [0], [1], [0, 0, 1, 1], [], []>} : vector<16x8xf32>, vector<8x16xf32>, vector<16x16xf32> -> vector<16x16xf32>
    %17 = arith.addf %12, %16 : vector<16x16xf32>
    %c0_13 = arith.constant 0 : index
    %c0_14 = arith.constant 0 : index
    %18 = vector.load %arg2[%c0_13, %c0_14] : memref<8x128xf32, #tpu.memory_space<vmem>>, vector<1x16xf32>
    %19 = vector.broadcast %18 : vector<1x16xf32> to vector<16x16xf32>
    %20 = arith.addf %17, %19 : vector<16x16xf32>
    %c0_15 = arith.constant 0 : index
    %c16_16 = arith.constant 16 : index
    %21 = vector.load %arg2[%c0_15, %c16_16] : memref<8x128xf32, #tpu.memory_space<vmem>>, vector<1x16xf32>
    %22 = vector.broadcast %21 : vector<1x16xf32> to vector<16x16xf32>
    %23 = arith.mulf %20, %22 : vector<16x16xf32>
    %c0_17 = arith.constant 0 : index
    %c112_18 = arith.constant 112 : index
    %24 = vector.load %arg2[%c0_17, %c112_18] : memref<8x128xf32, #tpu.memory_space<vmem>>, vector<1x16xf32>
    %25 = vector.broadcast %24 : vector<1x16xf32> to vector<16x16xf32>
    %26 = arith.addf %23, %25 : vector<16x16xf32>
    %cst_19 = arith.constant 0.000000e+00 : f32
    %27 = vector.broadcast %cst_19 : f32 to vector<16x16xf32>
    %28 = arith.maximumf %26, %27 : vector<16x16xf32>
    %c80_20 = arith.constant 80 : index
    %c64 = arith.constant 64 : index
    %29 = vector.load %arg1[%c80_20, %c64] : memref<144x128xf32, #tpu.memory_space<vmem>>, vector<8x16xf32>
    %cst_21 = arith.constant dense<0.000000e+00> : vector<8x16xf32>
    %30 = tpu.matmul %29, %28, %cst_21 {dimension_numbers = #tpu.dot_dimension_numbers<[1], [0], [0], [1], [0, 0, 1, 1], [], []>} : vector<8x16xf32>, vector<16x16xf32>, vector<8x16xf32> -> vector<8x16xf32>
    %c0_22 = arith.constant 0 : index
    %c48_23 = arith.constant 48 : index
    %31 = vector.load %arg1[%c0_22, %c48_23] : memref<144x128xf32, #tpu.memory_space<vmem>>, vector<16x16xf32>
    %cst_24 = arith.constant dense<0.000000e+00> : vector<8x16xf32>
    %32 = tpu.matmul %30, %31, %cst_24 {dimension_numbers = #tpu.dot_dimension_numbers<[1], [0], [0], [1], [0, 0, 1, 1], [], []>} : vector<8x16xf32>, vector<16x16xf32>, vector<8x16xf32> -> vector<8x16xf32>
    %c80_25 = arith.constant 80 : index
    %c80_26 = arith.constant 80 : index
    %33 = vector.load %arg1[%c80_25, %c80_26] : memref<144x128xf32, #tpu.memory_space<vmem>>, vector<8x16xf32>
    %cst_27 = arith.constant dense<0.000000e+00> : vector<8x16xf32>
    %34 = tpu.matmul %33, %28, %cst_27 {dimension_numbers = #tpu.dot_dimension_numbers<[1], [0], [0], [1], [0, 0, 1, 1], [], []>} : vector<8x16xf32>, vector<16x16xf32>, vector<8x16xf32> -> vector<8x16xf32>
    %c0_28 = arith.constant 0 : index
    %c64_29 = arith.constant 64 : index
    %35 = vector.load %arg1[%c0_28, %c64_29] : memref<144x128xf32, #tpu.memory_space<vmem>>, vector<16x16xf32>
    %cst_30 = arith.constant dense<0.000000e+00> : vector<8x16xf32>
    %36 = tpu.matmul %34, %35, %cst_30 {dimension_numbers = #tpu.dot_dimension_numbers<[1], [0], [0], [1], [0, 0, 1, 1], [], []>} : vector<8x16xf32>, vector<16x16xf32>, vector<8x16xf32> -> vector<8x16xf32>
    %37 = arith.addf %32, %36 : vector<8x16xf32>
    %c80_31 = arith.constant 80 : index
    %c96_32 = arith.constant 96 : index
    %38 = vector.load %arg1[%c80_31, %c96_32] : memref<144x128xf32, #tpu.memory_space<vmem>>, vector<8x16xf32>
    %cst_33 = arith.constant dense<0.000000e+00> : vector<8x16xf32>
    %39 = tpu.matmul %38, %28, %cst_33 {dimension_numbers = #tpu.dot_dimension_numbers<[1], [0], [0], [1], [0, 0, 1, 1], [], []>} : vector<8x16xf32>, vector<16x16xf32>, vector<8x16xf32> -> vector<8x16xf32>
    %c0_34 = arith.constant 0 : index
    %c80_35 = arith.constant 80 : index
    %40 = vector.load %arg1[%c0_34, %c80_35] : memref<144x128xf32, #tpu.memory_space<vmem>>, vector<16x16xf32>
    %cst_36 = arith.constant dense<0.000000e+00> : vector<8x16xf32>
    %41 = tpu.matmul %39, %40, %cst_36 {dimension_numbers = #tpu.dot_dimension_numbers<[1], [0], [0], [1], [0, 0, 1, 1], [], []>} : vector<8x16xf32>, vector<16x16xf32>, vector<8x16xf32> -> vector<8x16xf32>
    %42 = arith.addf %37, %41 : vector<8x16xf32>
    %c1 = arith.constant 1 : index
    %c80_37 = arith.constant 80 : index
    %43 = vector.load %arg2[%c1, %c80_37] : memref<8x128xf32, #tpu.memory_space<vmem>>, vector<1x16xf32>
    %44 = vector.broadcast %43 : vector<1x16xf32> to vector<8x16xf32>
    %45 = arith.addf %42, %44 : vector<8x16xf32>
    %cst_38 = arith.constant 0.000000e+00 : f32
    %46 = vector.broadcast %cst_38 : f32 to vector<8x16xf32>
    %47 = arith.maximumf %45, %46 : vector<8x16xf32>
    %c80_39 = arith.constant 80 : index
    %c112_40 = arith.constant 112 : index
    %48 = vector.load %arg1[%c80_39, %c112_40] : memref<144x128xf32, #tpu.memory_space<vmem>>, vector<8x8xf32>
    %cst_41 = arith.constant dense<0.000000e+00> : vector<8x16xf32>
    %49 = tpu.matmul %48, %47, %cst_41 {dimension_numbers = #tpu.dot_dimension_numbers<[1], [0], [0], [1], [0, 0, 1, 1], [], []>} : vector<8x8xf32>, vector<8x16xf32>, vector<8x16xf32> -> vector<8x16xf32>
    %c0_42 = arith.constant 0 : index
    %c96_43 = arith.constant 96 : index
    %50 = vector.load %arg1[%c0_42, %c96_43] : memref<144x128xf32, #tpu.memory_space<vmem>>, vector<16x16xf32>
    %cst_44 = arith.constant dense<0.000000e+00> : vector<8x16xf32>
    %51 = tpu.matmul %49, %50, %cst_44 {dimension_numbers = #tpu.dot_dimension_numbers<[1], [0], [0], [1], [0, 0, 1, 1], [], []>} : vector<8x16xf32>, vector<16x16xf32>, vector<8x16xf32> -> vector<8x16xf32>
    %c0_45 = arith.constant 0 : index
    %c112_46 = arith.constant 112 : index
    %52 = vector.load %arg1[%c0_45, %c112_46] : memref<144x128xf32, #tpu.memory_space<vmem>>, vector<16x16xf32>
    %cst_47 = arith.constant dense<0.000000e+00> : vector<8x16xf32>
    %53 = tpu.matmul %47, %52, %cst_47 {dimension_numbers = #tpu.dot_dimension_numbers<[1], [0], [0], [1], [0, 0, 1, 1], [], []>} : vector<8x16xf32>, vector<16x16xf32>, vector<8x16xf32> -> vector<8x16xf32>
    %54 = arith.addf %51, %53 : vector<8x16xf32>
    %c96_48 = arith.constant 96 : index
    %c0_49 = arith.constant 0 : index
    %55 = vector.load %arg1[%c96_48, %c0_49] : memref<144x128xf32, #tpu.memory_space<vmem>>, vector<8x8xf32>
    %cst_50 = arith.constant dense<0.000000e+00> : vector<8x16xf32>
    %56 = tpu.matmul %55, %47, %cst_50 {dimension_numbers = #tpu.dot_dimension_numbers<[1], [0], [0], [1], [0, 0, 1, 1], [], []>} : vector<8x8xf32>, vector<8x16xf32>, vector<8x16xf32> -> vector<8x16xf32>
    %c16_51 = arith.constant 16 : index
    %c0_52 = arith.constant 0 : index
    %57 = vector.load %arg1[%c16_51, %c0_52] : memref<144x128xf32, #tpu.memory_space<vmem>>, vector<16x16xf32>
    %cst_53 = arith.constant dense<0.000000e+00> : vector<8x16xf32>
    %58 = tpu.matmul %56, %57, %cst_53 {dimension_numbers = #tpu.dot_dimension_numbers<[1], [0], [0], [1], [0, 0, 1, 1], [], []>} : vector<8x16xf32>, vector<16x16xf32>, vector<8x16xf32> -> vector<8x16xf32>
    %59 = arith.addf %54, %58 : vector<8x16xf32>
    %c80_54 = arith.constant 80 : index
    %c80_55 = arith.constant 80 : index
    %60 = vector.load %arg1[%c80_54, %c80_55] : memref<144x128xf32, #tpu.memory_space<vmem>>, vector<8x16xf32>
    %cst_56 = arith.constant dense<0.000000e+00> : vector<8x16xf32>
    %61 = tpu.matmul %60, %20, %cst_56 {dimension_numbers = #tpu.dot_dimension_numbers<[1], [0], [0], [1], [0, 0, 1, 1], [], []>} : vector<8x16xf32>, vector<16x16xf32>, vector<8x16xf32> -> vector<8x16xf32>
    %c64_57 = arith.constant 64 : index
    %c112_58 = arith.constant 112 : index
    %62 = vector.load %arg1[%c64_57, %c112_58] : memref<144x128xf32, #tpu.memory_space<vmem>>, vector<16x16xf32>
    %cst_59 = arith.constant dense<0.000000e+00> : vector<8x16xf32>
    %63 = tpu.matmul %61, %62, %cst_59 {dimension_numbers = #tpu.dot_dimension_numbers<[1], [0], [0], [1], [0, 0, 1, 1], [], []>} : vector<8x16xf32>, vector<16x16xf32>, vector<8x16xf32> -> vector<8x16xf32>
    %c2_60 = arith.constant 2 : index
    %c48_61 = arith.constant 48 : index
    %64 = vector.load %arg2[%c2_60, %c48_61] : memref<8x128xf32, #tpu.memory_space<vmem>>, vector<1x16xf32>
    %65 = vector.broadcast %64 : vector<1x16xf32> to vector<8x16xf32>
    %66 = arith.addf %63, %65 : vector<8x16xf32>
    %67 = arith.addf %59, %66 : vector<8x16xf32>
    %c0_62 = arith.constant 0 : index
    %c32_63 = arith.constant 32 : index
    %68 = vector.load %arg2[%c0_62, %c32_63] : memref<8x128xf32, #tpu.memory_space<vmem>>, vector<1x16xf32>
    %69 = vector.broadcast %68 : vector<1x16xf32> to vector<8x16xf32>
    %70 = arith.mulf %67, %69 : vector<8x16xf32>
    %c1_64 = arith.constant 1 : index
    %c0_65 = arith.constant 0 : index
    %71 = vector.load %arg2[%c1_64, %c0_65] : memref<8x128xf32, #tpu.memory_space<vmem>>, vector<1x16xf32>
    %72 = vector.broadcast %71 : vector<1x16xf32> to vector<8x16xf32>
    %73 = arith.addf %70, %72 : vector<8x16xf32>
    %cst_66 = arith.constant 0.000000e+00 : f32
    %74 = vector.broadcast %cst_66 : f32 to vector<8x16xf32>
    %75 = arith.maximumf %73, %74 : vector<8x16xf32>
    %c80_67 = arith.constant 80 : index
    %c112_68 = arith.constant 112 : index
    %76 = vector.load %arg1[%c80_67, %c112_68] : memref<144x128xf32, #tpu.memory_space<vmem>>, vector<8x8xf32>
    %cst_69 = arith.constant dense<0.000000e+00> : vector<8x16xf32>
    %77 = tpu.matmul %76, %75, %cst_69 {dimension_numbers = #tpu.dot_dimension_numbers<[1], [0], [0], [1], [0, 0, 1, 1], [], []>} : vector<8x8xf32>, vector<8x16xf32>, vector<8x16xf32> -> vector<8x16xf32>
    %c16_70 = arith.constant 16 : index
    %c16_71 = arith.constant 16 : index
    %78 = vector.load %arg1[%c16_70, %c16_71] : memref<144x128xf32, #tpu.memory_space<vmem>>, vector<16x16xf32>
    %cst_72 = arith.constant dense<0.000000e+00> : vector<8x16xf32>
    %79 = tpu.matmul %77, %78, %cst_72 {dimension_numbers = #tpu.dot_dimension_numbers<[1], [0], [0], [1], [0, 0, 1, 1], [], []>} : vector<8x16xf32>, vector<16x16xf32>, vector<8x16xf32> -> vector<8x16xf32>
    %c16_73 = arith.constant 16 : index
    %c32_74 = arith.constant 32 : index
    %80 = vector.load %arg1[%c16_73, %c32_74] : memref<144x128xf32, #tpu.memory_space<vmem>>, vector<16x16xf32>
    %cst_75 = arith.constant dense<0.000000e+00> : vector<8x16xf32>
    %81 = tpu.matmul %75, %80, %cst_75 {dimension_numbers = #tpu.dot_dimension_numbers<[1], [0], [0], [1], [0, 0, 1, 1], [], []>} : vector<8x16xf32>, vector<16x16xf32>, vector<8x16xf32> -> vector<8x16xf32>
    %82 = arith.addf %79, %81 : vector<8x16xf32>
    %c96_76 = arith.constant 96 : index
    %c0_77 = arith.constant 0 : index
    %83 = vector.load %arg1[%c96_76, %c0_77] : memref<144x128xf32, #tpu.memory_space<vmem>>, vector<8x8xf32>
    %cst_78 = arith.constant dense<0.000000e+00> : vector<8x16xf32>
    %84 = tpu.matmul %83, %75, %cst_78 {dimension_numbers = #tpu.dot_dimension_numbers<[1], [0], [0], [1], [0, 0, 1, 1], [], []>} : vector<8x8xf32>, vector<8x16xf32>, vector<8x16xf32> -> vector<8x16xf32>
    %c16_79 = arith.constant 16 : index
    %c48_80 = arith.constant 48 : index
    %85 = vector.load %arg1[%c16_79, %c48_80] : memref<144x128xf32, #tpu.memory_space<vmem>>, vector<16x16xf32>
    %cst_81 = arith.constant dense<0.000000e+00> : vector<8x16xf32>
    %86 = tpu.matmul %84, %85, %cst_81 {dimension_numbers = #tpu.dot_dimension_numbers<[1], [0], [0], [1], [0, 0, 1, 1], [], []>} : vector<8x16xf32>, vector<16x16xf32>, vector<8x16xf32> -> vector<8x16xf32>
    %87 = arith.addf %82, %86 : vector<8x16xf32>
    %c1_82 = arith.constant 1 : index
    %c96_83 = arith.constant 96 : index
    %88 = vector.load %arg2[%c1_82, %c96_83] : memref<8x128xf32, #tpu.memory_space<vmem>>, vector<1x16xf32>
    %89 = vector.broadcast %88 : vector<1x16xf32> to vector<8x16xf32>
    %90 = arith.addf %87, %89 : vector<8x16xf32>
    %cst_84 = arith.constant 0.000000e+00 : f32
    %91 = vector.broadcast %cst_84 : f32 to vector<8x16xf32>
    %92 = arith.maximumf %90, %91 : vector<8x16xf32>
    %c80_85 = arith.constant 80 : index
    %c112_86 = arith.constant 112 : index
    %93 = vector.load %arg1[%c80_85, %c112_86] : memref<144x128xf32, #tpu.memory_space<vmem>>, vector<8x8xf32>
    %cst_87 = arith.constant dense<0.000000e+00> : vector<8x16xf32>
    %94 = tpu.matmul %93, %92, %cst_87 {dimension_numbers = #tpu.dot_dimension_numbers<[1], [0], [0], [1], [0, 0, 1, 1], [], []>} : vector<8x8xf32>, vector<8x16xf32>, vector<8x16xf32> -> vector<8x16xf32>
    %c16_88 = arith.constant 16 : index
    %c64_89 = arith.constant 64 : index
    %95 = vector.load %arg1[%c16_88, %c64_89] : memref<144x128xf32, #tpu.memory_space<vmem>>, vector<16x16xf32>
    %cst_90 = arith.constant dense<0.000000e+00> : vector<8x16xf32>
    %96 = tpu.matmul %94, %95, %cst_90 {dimension_numbers = #tpu.dot_dimension_numbers<[1], [0], [0], [1], [0, 0, 1, 1], [], []>} : vector<8x16xf32>, vector<16x16xf32>, vector<8x16xf32> -> vector<8x16xf32>
    %c16_91 = arith.constant 16 : index
    %c80_92 = arith.constant 80 : index
    %97 = vector.load %arg1[%c16_91, %c80_92] : memref<144x128xf32, #tpu.memory_space<vmem>>, vector<16x16xf32>
    %cst_93 = arith.constant dense<0.000000e+00> : vector<8x16xf32>
    %98 = tpu.matmul %92, %97, %cst_93 {dimension_numbers = #tpu.dot_dimension_numbers<[1], [0], [0], [1], [0, 0, 1, 1], [], []>} : vector<8x16xf32>, vector<16x16xf32>, vector<8x16xf32> -> vector<8x16xf32>
    %99 = arith.addf %96, %98 : vector<8x16xf32>
    %c96_94 = arith.constant 96 : index
    %c0_95 = arith.constant 0 : index
    %100 = vector.load %arg1[%c96_94, %c0_95] : memref<144x128xf32, #tpu.memory_space<vmem>>, vector<8x8xf32>
    %cst_96 = arith.constant dense<0.000000e+00> : vector<8x16xf32>
    %101 = tpu.matmul %100, %92, %cst_96 {dimension_numbers = #tpu.dot_dimension_numbers<[1], [0], [0], [1], [0, 0, 1, 1], [], []>} : vector<8x8xf32>, vector<8x16xf32>, vector<8x16xf32> -> vector<8x16xf32>
    %c16_97 = arith.constant 16 : index
    %c96_98 = arith.constant 96 : index
    %102 = vector.load %arg1[%c16_97, %c96_98] : memref<144x128xf32, #tpu.memory_space<vmem>>, vector<16x16xf32>
    %cst_99 = arith.constant dense<0.000000e+00> : vector<8x16xf32>
    %103 = tpu.matmul %101, %102, %cst_99 {dimension_numbers = #tpu.dot_dimension_numbers<[1], [0], [0], [1], [0, 0, 1, 1], [], []>} : vector<8x16xf32>, vector<16x16xf32>, vector<8x16xf32> -> vector<8x16xf32>
    %104 = arith.addf %99, %103 : vector<8x16xf32>
    %105 = arith.addf %104, %67 : vector<8x16xf32>
    %c0_100 = arith.constant 0 : index
    %c48_101 = arith.constant 48 : index
    %106 = vector.load %arg2[%c0_100, %c48_101] : memref<8x128xf32, #tpu.memory_space<vmem>>, vector<1x16xf32>
    %107 = vector.broadcast %106 : vector<1x16xf32> to vector<8x16xf32>
    %108 = arith.mulf %105, %107 : vector<8x16xf32>
    %c1_102 = arith.constant 1 : index
    %c16_103 = arith.constant 16 : index
    %109 = vector.load %arg2[%c1_102, %c16_103] : memref<8x128xf32, #tpu.memory_space<vmem>>, vector<1x16xf32>
    %110 = vector.broadcast %109 : vector<1x16xf32> to vector<8x16xf32>
    %111 = arith.addf %108, %110 : vector<8x16xf32>
    %cst_104 = arith.constant 0.000000e+00 : f32
    %112 = vector.broadcast %cst_104 : f32 to vector<8x16xf32>
    %113 = arith.maximumf %111, %112 : vector<8x16xf32>
    %c96_105 = arith.constant 96 : index
    %c16_106 = arith.constant 16 : index
    %114 = vector.load %arg1[%c96_105, %c16_106] : memref<144x128xf32, #tpu.memory_space<vmem>>, vector<4x8xf32>
    %cst_107 = arith.constant dense<0.000000e+00> : vector<4x16xf32>
    %115 = tpu.matmul %114, %113, %cst_107 {dimension_numbers = #tpu.dot_dimension_numbers<[1], [0], [0], [1], [0, 0, 1, 1], [], []>} : vector<4x8xf32>, vector<8x16xf32>, vector<4x16xf32> -> vector<4x16xf32>
    %c16_108 = arith.constant 16 : index
    %c112_109 = arith.constant 112 : index
    %116 = vector.load %arg1[%c16_108, %c112_109] : memref<144x128xf32, #tpu.memory_space<vmem>>, vector<16x16xf32>
    %cst_110 = arith.constant dense<0.000000e+00> : vector<4x16xf32>
    %117 = tpu.matmul %115, %116, %cst_110 {dimension_numbers = #tpu.dot_dimension_numbers<[1], [0], [0], [1], [0, 0, 1, 1], [], []>} : vector<4x16xf32>, vector<16x16xf32>, vector<4x16xf32> -> vector<4x16xf32>
    %c96_111 = arith.constant 96 : index
    %c32_112 = arith.constant 32 : index
    %118 = vector.load %arg1[%c96_111, %c32_112] : memref<144x128xf32, #tpu.memory_space<vmem>>, vector<4x8xf32>
    %cst_113 = arith.constant dense<0.000000e+00> : vector<4x16xf32>
    %119 = tpu.matmul %118, %113, %cst_113 {dimension_numbers = #tpu.dot_dimension_numbers<[1], [0], [0], [1], [0, 0, 1, 1], [], []>} : vector<4x8xf32>, vector<8x16xf32>, vector<4x16xf32> -> vector<4x16xf32>
    %c32_114 = arith.constant 32 : index
    %c0_115 = arith.constant 0 : index
    %120 = vector.load %arg1[%c32_114, %c0_115] : memref<144x128xf32, #tpu.memory_space<vmem>>, vector<16x16xf32>
    %cst_116 = arith.constant dense<0.000000e+00> : vector<4x16xf32>
    %121 = tpu.matmul %119, %120, %cst_116 {dimension_numbers = #tpu.dot_dimension_numbers<[1], [0], [0], [1], [0, 0, 1, 1], [], []>} : vector<4x16xf32>, vector<16x16xf32>, vector<4x16xf32> -> vector<4x16xf32>
    %122 = arith.addf %117, %121 : vector<4x16xf32>
    %c96_117 = arith.constant 96 : index
    %c48_118 = arith.constant 48 : index
    %123 = vector.load %arg1[%c96_117, %c48_118] : memref<144x128xf32, #tpu.memory_space<vmem>>, vector<4x8xf32>
    %cst_119 = arith.constant dense<0.000000e+00> : vector<4x16xf32>
    %124 = tpu.matmul %123, %113, %cst_119 {dimension_numbers = #tpu.dot_dimension_numbers<[1], [0], [0], [1], [0, 0, 1, 1], [], []>} : vector<4x8xf32>, vector<8x16xf32>, vector<4x16xf32> -> vector<4x16xf32>
    %c32_120 = arith.constant 32 : index
    %c16_121 = arith.constant 16 : index
    %125 = vector.load %arg1[%c32_120, %c16_121] : memref<144x128xf32, #tpu.memory_space<vmem>>, vector<16x16xf32>
    %cst_122 = arith.constant dense<0.000000e+00> : vector<4x16xf32>
    %126 = tpu.matmul %124, %125, %cst_122 {dimension_numbers = #tpu.dot_dimension_numbers<[1], [0], [0], [1], [0, 0, 1, 1], [], []>} : vector<4x16xf32>, vector<16x16xf32>, vector<4x16xf32> -> vector<4x16xf32>
    %127 = arith.addf %122, %126 : vector<4x16xf32>
    %c1_123 = arith.constant 1 : index
    %c112_124 = arith.constant 112 : index
    %128 = vector.load %arg2[%c1_123, %c112_124] : memref<8x128xf32, #tpu.memory_space<vmem>>, vector<1x16xf32>
    %129 = vector.broadcast %128 : vector<1x16xf32> to vector<4x16xf32>
    %130 = arith.addf %127, %129 : vector<4x16xf32>
    %cst_125 = arith.constant 0.000000e+00 : f32
    %131 = vector.broadcast %cst_125 : f32 to vector<4x16xf32>
    %132 = arith.maximumf %130, %131 : vector<4x16xf32>
    %c96_126 = arith.constant 96 : index
    %c64_127 = arith.constant 64 : index
    %133 = vector.load %arg1[%c96_126, %c64_127] : memref<144x128xf32, #tpu.memory_space<vmem>>, vector<4x4xf32>
    %cst_128 = arith.constant dense<0.000000e+00> : vector<4x16xf32>
    %134 = tpu.matmul %133, %132, %cst_128 {dimension_numbers = #tpu.dot_dimension_numbers<[1], [0], [0], [1], [0, 0, 1, 1], [], []>} : vector<4x4xf32>, vector<4x16xf32>, vector<4x16xf32> -> vector<4x16xf32>
    %c32_129 = arith.constant 32 : index
    %c32_130 = arith.constant 32 : index
    %135 = vector.load %arg1[%c32_129, %c32_130] : memref<144x128xf32, #tpu.memory_space<vmem>>, vector<16x16xf32>
    %cst_131 = arith.constant dense<0.000000e+00> : vector<4x16xf32>
    %136 = tpu.matmul %134, %135, %cst_131 {dimension_numbers = #tpu.dot_dimension_numbers<[1], [0], [0], [1], [0, 0, 1, 1], [], []>} : vector<4x16xf32>, vector<16x16xf32>, vector<4x16xf32> -> vector<4x16xf32>
    %c32_132 = arith.constant 32 : index
    %c48_133 = arith.constant 48 : index
    %137 = vector.load %arg1[%c32_132, %c48_133] : memref<144x128xf32, #tpu.memory_space<vmem>>, vector<16x16xf32>
    %cst_134 = arith.constant dense<0.000000e+00> : vector<4x16xf32>
    %138 = tpu.matmul %132, %137, %cst_134 {dimension_numbers = #tpu.dot_dimension_numbers<[1], [0], [0], [1], [0, 0, 1, 1], [], []>} : vector<4x16xf32>, vector<16x16xf32>, vector<4x16xf32> -> vector<4x16xf32>
    %139 = arith.addf %136, %138 : vector<4x16xf32>
    %c96_135 = arith.constant 96 : index
    %c80_136 = arith.constant 80 : index
    %140 = vector.load %arg1[%c96_135, %c80_136] : memref<144x128xf32, #tpu.memory_space<vmem>>, vector<4x4xf32>
    %cst_137 = arith.constant dense<0.000000e+00> : vector<4x16xf32>
    %141 = tpu.matmul %140, %132, %cst_137 {dimension_numbers = #tpu.dot_dimension_numbers<[1], [0], [0], [1], [0, 0, 1, 1], [], []>} : vector<4x4xf32>, vector<4x16xf32>, vector<4x16xf32> -> vector<4x16xf32>
    %c32_138 = arith.constant 32 : index
    %c64_139 = arith.constant 64 : index
    %142 = vector.load %arg1[%c32_138, %c64_139] : memref<144x128xf32, #tpu.memory_space<vmem>>, vector<16x16xf32>
    %cst_140 = arith.constant dense<0.000000e+00> : vector<4x16xf32>
    %143 = tpu.matmul %141, %142, %cst_140 {dimension_numbers = #tpu.dot_dimension_numbers<[1], [0], [0], [1], [0, 0, 1, 1], [], []>} : vector<4x16xf32>, vector<16x16xf32>, vector<4x16xf32> -> vector<4x16xf32>
    %144 = arith.addf %139, %143 : vector<4x16xf32>
    %c96_141 = arith.constant 96 : index
    %c32_142 = arith.constant 32 : index
    %145 = vector.load %arg1[%c96_141, %c32_142] : memref<144x128xf32, #tpu.memory_space<vmem>>, vector<4x8xf32>
    %cst_143 = arith.constant dense<0.000000e+00> : vector<4x16xf32>
    %146 = tpu.matmul %145, %105, %cst_143 {dimension_numbers = #tpu.dot_dimension_numbers<[1], [0], [0], [1], [0, 0, 1, 1], [], []>} : vector<4x8xf32>, vector<8x16xf32>, vector<4x16xf32> -> vector<4x16xf32>
    %c80_144 = arith.constant 80 : index
    %c0_145 = arith.constant 0 : index
    %147 = vector.load %arg1[%c80_144, %c0_145] : memref<144x128xf32, #tpu.memory_space<vmem>>, vector<16x16xf32>
    %cst_146 = arith.constant dense<0.000000e+00> : vector<4x16xf32>
    %148 = tpu.matmul %146, %147, %cst_146 {dimension_numbers = #tpu.dot_dimension_numbers<[1], [0], [0], [1], [0, 0, 1, 1], [], []>} : vector<4x16xf32>, vector<16x16xf32>, vector<4x16xf32> -> vector<4x16xf32>
    %c2_147 = arith.constant 2 : index
    %c64_148 = arith.constant 64 : index
    %149 = vector.load %arg2[%c2_147, %c64_148] : memref<8x128xf32, #tpu.memory_space<vmem>>, vector<1x16xf32>
    %150 = vector.broadcast %149 : vector<1x16xf32> to vector<4x16xf32>
    %151 = arith.addf %148, %150 : vector<4x16xf32>
    %152 = arith.addf %144, %151 : vector<4x16xf32>
    %c0_149 = arith.constant 0 : index
    %c64_150 = arith.constant 64 : index
    %153 = vector.load %arg2[%c0_149, %c64_150] : memref<8x128xf32, #tpu.memory_space<vmem>>, vector<1x16xf32>
    %154 = vector.broadcast %153 : vector<1x16xf32> to vector<4x16xf32>
    %155 = arith.mulf %152, %154 : vector<4x16xf32>
    %c1_151 = arith.constant 1 : index
    %c32_152 = arith.constant 32 : index
    %156 = vector.load %arg2[%c1_151, %c32_152] : memref<8x128xf32, #tpu.memory_space<vmem>>, vector<1x16xf32>
    %157 = vector.broadcast %156 : vector<1x16xf32> to vector<4x16xf32>
    %158 = arith.addf %155, %157 : vector<4x16xf32>
    %cst_153 = arith.constant 0.000000e+00 : f32
    %159 = vector.broadcast %cst_153 : f32 to vector<4x16xf32>
    %160 = arith.maximumf %158, %159 : vector<4x16xf32>
    %c96_154 = arith.constant 96 : index
    %c64_155 = arith.constant 64 : index
    %161 = vector.load %arg1[%c96_154, %c64_155] : memref<144x128xf32, #tpu.memory_space<vmem>>, vector<4x4xf32>
    %cst_156 = arith.constant dense<0.000000e+00> : vector<4x16xf32>
    %162 = tpu.matmul %161, %160, %cst_156 {dimension_numbers = #tpu.dot_dimension_numbers<[1], [0], [0], [1], [0, 0, 1, 1], [], []>} : vector<4x4xf32>, vector<4x16xf32>, vector<4x16xf32> -> vector<4x16xf32>
    %c32_157 = arith.constant 32 : index
    %c80_158 = arith.constant 80 : index
    %163 = vector.load %arg1[%c32_157, %c80_158] : memref<144x128xf32, #tpu.memory_space<vmem>>, vector<16x16xf32>
    %cst_159 = arith.constant dense<0.000000e+00> : vector<4x16xf32>
    %164 = tpu.matmul %162, %163, %cst_159 {dimension_numbers = #tpu.dot_dimension_numbers<[1], [0], [0], [1], [0, 0, 1, 1], [], []>} : vector<4x16xf32>, vector<16x16xf32>, vector<4x16xf32> -> vector<4x16xf32>
    %c32_160 = arith.constant 32 : index
    %c96_161 = arith.constant 96 : index
    %165 = vector.load %arg1[%c32_160, %c96_161] : memref<144x128xf32, #tpu.memory_space<vmem>>, vector<16x16xf32>
    %cst_162 = arith.constant dense<0.000000e+00> : vector<4x16xf32>
    %166 = tpu.matmul %160, %165, %cst_162 {dimension_numbers = #tpu.dot_dimension_numbers<[1], [0], [0], [1], [0, 0, 1, 1], [], []>} : vector<4x16xf32>, vector<16x16xf32>, vector<4x16xf32> -> vector<4x16xf32>
    %167 = arith.addf %164, %166 : vector<4x16xf32>
    %c96_163 = arith.constant 96 : index
    %c80_164 = arith.constant 80 : index
    %168 = vector.load %arg1[%c96_163, %c80_164] : memref<144x128xf32, #tpu.memory_space<vmem>>, vector<4x4xf32>
    %cst_165 = arith.constant dense<0.000000e+00> : vector<4x16xf32>
    %169 = tpu.matmul %168, %160, %cst_165 {dimension_numbers = #tpu.dot_dimension_numbers<[1], [0], [0], [1], [0, 0, 1, 1], [], []>} : vector<4x4xf32>, vector<4x16xf32>, vector<4x16xf32> -> vector<4x16xf32>
    %c32_166 = arith.constant 32 : index
    %c112_167 = arith.constant 112 : index
    %170 = vector.load %arg1[%c32_166, %c112_167] : memref<144x128xf32, #tpu.memory_space<vmem>>, vector<16x16xf32>
    %cst_168 = arith.constant dense<0.000000e+00> : vector<4x16xf32>
    %171 = tpu.matmul %169, %170, %cst_168 {dimension_numbers = #tpu.dot_dimension_numbers<[1], [0], [0], [1], [0, 0, 1, 1], [], []>} : vector<4x16xf32>, vector<16x16xf32>, vector<4x16xf32> -> vector<4x16xf32>
    %172 = arith.addf %167, %171 : vector<4x16xf32>
    %c2_169 = arith.constant 2 : index
    %c0_170 = arith.constant 0 : index
    %173 = vector.load %arg2[%c2_169, %c0_170] : memref<8x128xf32, #tpu.memory_space<vmem>>, vector<1x16xf32>
    %174 = vector.broadcast %173 : vector<1x16xf32> to vector<4x16xf32>
    %175 = arith.addf %172, %174 : vector<4x16xf32>
    %cst_171 = arith.constant 0.000000e+00 : f32
    %176 = vector.broadcast %cst_171 : f32 to vector<4x16xf32>
    %177 = arith.maximumf %175, %176 : vector<4x16xf32>
    %c96_172 = arith.constant 96 : index
    %c64_173 = arith.constant 64 : index
    %178 = vector.load %arg1[%c96_172, %c64_173] : memref<144x128xf32, #tpu.memory_space<vmem>>, vector<4x4xf32>
    %cst_174 = arith.constant dense<0.000000e+00> : vector<4x16xf32>
    %179 = tpu.matmul %178, %177, %cst_174 {dimension_numbers = #tpu.dot_dimension_numbers<[1], [0], [0], [1], [0, 0, 1, 1], [], []>} : vector<4x4xf32>, vector<4x16xf32>, vector<4x16xf32> -> vector<4x16xf32>
    %c48_175 = arith.constant 48 : index
    %c0_176 = arith.constant 0 : index
    %180 = vector.load %arg1[%c48_175, %c0_176] : memref<144x128xf32, #tpu.memory_space<vmem>>, vector<16x16xf32>
    %cst_177 = arith.constant dense<0.000000e+00> : vector<4x16xf32>
    %181 = tpu.matmul %179, %180, %cst_177 {dimension_numbers = #tpu.dot_dimension_numbers<[1], [0], [0], [1], [0, 0, 1, 1], [], []>} : vector<4x16xf32>, vector<16x16xf32>, vector<4x16xf32> -> vector<4x16xf32>
    %c48_178 = arith.constant 48 : index
    %c16_179 = arith.constant 16 : index
    %182 = vector.load %arg1[%c48_178, %c16_179] : memref<144x128xf32, #tpu.memory_space<vmem>>, vector<16x16xf32>
    %cst_180 = arith.constant dense<0.000000e+00> : vector<4x16xf32>
    %183 = tpu.matmul %177, %182, %cst_180 {dimension_numbers = #tpu.dot_dimension_numbers<[1], [0], [0], [1], [0, 0, 1, 1], [], []>} : vector<4x16xf32>, vector<16x16xf32>, vector<4x16xf32> -> vector<4x16xf32>
    %184 = arith.addf %181, %183 : vector<4x16xf32>
    %c96_181 = arith.constant 96 : index
    %c80_182 = arith.constant 80 : index
    %185 = vector.load %arg1[%c96_181, %c80_182] : memref<144x128xf32, #tpu.memory_space<vmem>>, vector<4x4xf32>
    %cst_183 = arith.constant dense<0.000000e+00> : vector<4x16xf32>
    %186 = tpu.matmul %185, %177, %cst_183 {dimension_numbers = #tpu.dot_dimension_numbers<[1], [0], [0], [1], [0, 0, 1, 1], [], []>} : vector<4x4xf32>, vector<4x16xf32>, vector<4x16xf32> -> vector<4x16xf32>
    %c48_184 = arith.constant 48 : index
    %c32_185 = arith.constant 32 : index
    %187 = vector.load %arg1[%c48_184, %c32_185] : memref<144x128xf32, #tpu.memory_space<vmem>>, vector<16x16xf32>
    %cst_186 = arith.constant dense<0.000000e+00> : vector<4x16xf32>
    %188 = tpu.matmul %186, %187, %cst_186 {dimension_numbers = #tpu.dot_dimension_numbers<[1], [0], [0], [1], [0, 0, 1, 1], [], []>} : vector<4x16xf32>, vector<16x16xf32>, vector<4x16xf32> -> vector<4x16xf32>
    %189 = arith.addf %184, %188 : vector<4x16xf32>
    %190 = arith.addf %189, %152 : vector<4x16xf32>
    %c0_187 = arith.constant 0 : index
    %c80_188 = arith.constant 80 : index
    %191 = vector.load %arg2[%c0_187, %c80_188] : memref<8x128xf32, #tpu.memory_space<vmem>>, vector<1x16xf32>
    %192 = vector.broadcast %191 : vector<1x16xf32> to vector<4x16xf32>
    %193 = arith.mulf %190, %192 : vector<4x16xf32>
    %c1_189 = arith.constant 1 : index
    %c48_190 = arith.constant 48 : index
    %194 = vector.load %arg2[%c1_189, %c48_190] : memref<8x128xf32, #tpu.memory_space<vmem>>, vector<1x16xf32>
    %195 = vector.broadcast %194 : vector<1x16xf32> to vector<4x16xf32>
    %196 = arith.addf %193, %195 : vector<4x16xf32>
    %cst_191 = arith.constant 0.000000e+00 : f32
    %197 = vector.broadcast %cst_191 : f32 to vector<4x16xf32>
    %198 = arith.maximumf %196, %197 : vector<4x16xf32>
    %c96_192 = arith.constant 96 : index
    %c96_193 = arith.constant 96 : index
    %199 = vector.load %arg1[%c96_192, %c96_193] : memref<144x128xf32, #tpu.memory_space<vmem>>, vector<2x4xf32>
    %cst_194 = arith.constant dense<0.000000e+00> : vector<2x16xf32>
    %200 = tpu.matmul %199, %198, %cst_194 {dimension_numbers = #tpu.dot_dimension_numbers<[1], [0], [0], [1], [0, 0, 1, 1], [], []>} : vector<2x4xf32>, vector<4x16xf32>, vector<2x16xf32> -> vector<2x16xf32>
    %c48_195 = arith.constant 48 : index
    %c64_196 = arith.constant 64 : index
    %201 = vector.load %arg1[%c48_195, %c64_196] : memref<144x128xf32, #tpu.memory_space<vmem>>, vector<16x16xf32>
    %cst_197 = arith.constant dense<0.000000e+00> : vector<2x16xf32>
    %202 = tpu.matmul %200, %201, %cst_197 {dimension_numbers = #tpu.dot_dimension_numbers<[1], [0], [0], [1], [0, 0, 1, 1], [], []>} : vector<2x16xf32>, vector<16x16xf32>, vector<2x16xf32> -> vector<2x16xf32>
    %c96_198 = arith.constant 96 : index
    %c112_199 = arith.constant 112 : index
    %203 = vector.load %arg1[%c96_198, %c112_199] : memref<144x128xf32, #tpu.memory_space<vmem>>, vector<2x4xf32>
    %cst_200 = arith.constant dense<0.000000e+00> : vector<2x16xf32>
    %204 = tpu.matmul %203, %198, %cst_200 {dimension_numbers = #tpu.dot_dimension_numbers<[1], [0], [0], [1], [0, 0, 1, 1], [], []>} : vector<2x4xf32>, vector<4x16xf32>, vector<2x16xf32> -> vector<2x16xf32>
    %c48_201 = arith.constant 48 : index
    %c80_202 = arith.constant 80 : index
    %205 = vector.load %arg1[%c48_201, %c80_202] : memref<144x128xf32, #tpu.memory_space<vmem>>, vector<16x16xf32>
    %cst_203 = arith.constant dense<0.000000e+00> : vector<2x16xf32>
    %206 = tpu.matmul %204, %205, %cst_203 {dimension_numbers = #tpu.dot_dimension_numbers<[1], [0], [0], [1], [0, 0, 1, 1], [], []>} : vector<2x16xf32>, vector<16x16xf32>, vector<2x16xf32> -> vector<2x16xf32>
    %207 = arith.addf %202, %206 : vector<2x16xf32>
    %c2_204 = arith.constant 2 : index
    %c16_205 = arith.constant 16 : index
    %208 = vector.load %arg2[%c2_204, %c16_205] : memref<8x128xf32, #tpu.memory_space<vmem>>, vector<1x16xf32>
    %209 = vector.broadcast %208 : vector<1x16xf32> to vector<2x16xf32>
    %210 = arith.addf %207, %209 : vector<2x16xf32>
    %cst_206 = arith.constant 0.000000e+00 : f32
    %211 = vector.broadcast %cst_206 : f32 to vector<2x16xf32>
    %212 = arith.maximumf %210, %211 : vector<2x16xf32>
    %c48_207 = arith.constant 48 : index
    %c112_208 = arith.constant 112 : index
    %213 = vector.load %arg1[%c48_207, %c112_208] : memref<144x128xf32, #tpu.memory_space<vmem>>, vector<16x16xf32>
    %cst_209 = arith.constant dense<0.000000e+00> : vector<2x16xf32>
    %214 = tpu.matmul %212, %213, %cst_209 {dimension_numbers = #tpu.dot_dimension_numbers<[1], [0], [0], [1], [0, 0, 1, 1], [], []>} : vector<2x16xf32>, vector<16x16xf32>, vector<2x16xf32> -> vector<2x16xf32>
    %c96_210 = arith.constant 96 : index
    %c96_211 = arith.constant 96 : index
    %215 = vector.load %arg1[%c96_210, %c96_211] : memref<144x128xf32, #tpu.memory_space<vmem>>, vector<2x4xf32>
    %cst_212 = arith.constant dense<0.000000e+00> : vector<2x16xf32>
    %216 = tpu.matmul %215, %190, %cst_212 {dimension_numbers = #tpu.dot_dimension_numbers<[1], [0], [0], [1], [0, 0, 1, 1], [], []>} : vector<2x4xf32>, vector<4x16xf32>, vector<2x16xf32> -> vector<2x16xf32>
    %c80_213 = arith.constant 80 : index
    %c16_214 = arith.constant 16 : index
    %217 = vector.load %arg1[%c80_213, %c16_214] : memref<144x128xf32, #tpu.memory_space<vmem>>, vector<16x16xf32>
    %cst_215 = arith.constant dense<0.000000e+00> : vector<2x16xf32>
    %218 = tpu.matmul %216, %217, %cst_215 {dimension_numbers = #tpu.dot_dimension_numbers<[1], [0], [0], [1], [0, 0, 1, 1], [], []>} : vector<2x16xf32>, vector<16x16xf32>, vector<2x16xf32> -> vector<2x16xf32>
    %c2_216 = arith.constant 2 : index
    %c80_217 = arith.constant 80 : index
    %219 = vector.load %arg2[%c2_216, %c80_217] : memref<8x128xf32, #tpu.memory_space<vmem>>, vector<1x16xf32>
    %220 = vector.broadcast %219 : vector<1x16xf32> to vector<2x16xf32>
    %221 = arith.addf %218, %220 : vector<2x16xf32>
    %222 = arith.addf %214, %221 : vector<2x16xf32>
    %c0_218 = arith.constant 0 : index
    %c96_219 = arith.constant 96 : index
    %223 = vector.load %arg2[%c0_218, %c96_219] : memref<8x128xf32, #tpu.memory_space<vmem>>, vector<1x16xf32>
    %224 = vector.broadcast %223 : vector<1x16xf32> to vector<2x16xf32>
    %225 = arith.mulf %222, %224 : vector<2x16xf32>
    %c1_220 = arith.constant 1 : index
    %c64_221 = arith.constant 64 : index
    %226 = vector.load %arg2[%c1_220, %c64_221] : memref<8x128xf32, #tpu.memory_space<vmem>>, vector<1x16xf32>
    %227 = vector.broadcast %226 : vector<1x16xf32> to vector<2x16xf32>
    %228 = arith.addf %225, %227 : vector<2x16xf32>
    %cst_222 = arith.constant 0.000000e+00 : f32
    %229 = vector.broadcast %cst_222 : f32 to vector<2x16xf32>
    %230 = arith.maximumf %228, %229 : vector<2x16xf32>
    %c64_223 = arith.constant 64 : index
    %c32_224 = arith.constant 32 : index
    %231 = vector.load %arg1[%c64_223, %c32_224] : memref<144x128xf32, #tpu.memory_space<vmem>>, vector<16x16xf32>
    %cst_225 = arith.constant dense<0.000000e+00> : vector<2x16xf32>
    %232 = tpu.matmul %230, %231, %cst_225 {dimension_numbers = #tpu.dot_dimension_numbers<[1], [0], [0], [1], [0, 0, 1, 1], [], []>} : vector<2x16xf32>, vector<16x16xf32>, vector<2x16xf32> -> vector<2x16xf32>
    %c2_226 = arith.constant 2 : index
    %c32_227 = arith.constant 32 : index
    %233 = vector.load %arg2[%c2_226, %c32_227] : memref<8x128xf32, #tpu.memory_space<vmem>>, vector<1x16xf32>
    %234 = vector.broadcast %233 : vector<1x16xf32> to vector<2x16xf32>
    %235 = arith.addf %232, %234 : vector<2x16xf32>
    %cst_228 = arith.constant 0.000000e+00 : f32
    %236 = vector.broadcast %cst_228 : f32 to vector<2x16xf32>
    %237 = arith.maximumf %235, %236 : vector<2x16xf32>
    %c64_229 = arith.constant 64 : index
    %c80_230 = arith.constant 80 : index
    %238 = vector.load %arg1[%c64_229, %c80_230] : memref<144x128xf32, #tpu.memory_space<vmem>>, vector<16x16xf32>
    %cst_231 = arith.constant dense<0.000000e+00> : vector<2x16xf32>
    %239 = tpu.matmul %237, %238, %cst_231 {dimension_numbers = #tpu.dot_dimension_numbers<[1], [0], [0], [1], [0, 0, 1, 1], [], []>} : vector<2x16xf32>, vector<16x16xf32>, vector<2x16xf32> -> vector<2x16xf32>
    %240 = arith.addf %239, %222 : vector<2x16xf32>
    %c2_232 = arith.constant 2 : index
    %c112_233 = arith.constant 112 : index
    %241 = vector.load %arg2[%c2_232, %c112_233] : memref<8x128xf32, #tpu.memory_space<vmem>>, vector<1x16xf32>
    %242 = vector.broadcast %241 : vector<1x16xf32> to vector<2x16xf32>
    %243 = arith.mulf %240, %242 : vector<2x16xf32>
    %cst_234 = arith.constant dense<0.000000e+00> : vector<2xf32>
    %244 = vector.multi_reduction <add>, %243, %cst_234 [1] : vector<2x16xf32> to vector<2xf32>
    %245 = vector.shape_cast %244 : vector<2xf32> to vector<2x1xf32>
    %c3 = arith.constant 3 : index
    %c0_235 = arith.constant 0 : index
    %246 = vector.load %arg2[%c3, %c0_235] : memref<8x128xf32, #tpu.memory_space<vmem>>, vector<1x1xf32>
    %247 = vector.broadcast %246 : vector<1x1xf32> to vector<2x1xf32>
    %248 = arith.addf %245, %247 : vector<2x1xf32>
    %c0_236 = arith.constant 0 : index
    %c0_237 = arith.constant 0 : index
    %249 = vector.load %arg3[%c0_236, %c0_237] : memref<2x1xf32, #tpu.memory_space<vmem>>, vector<2x1xf32>
    tpu.vector_store %arg3[%c0_236, %c0_237], %248 {strides = array<i32>} : memref<2x1xf32, #tpu.memory_space<vmem>>, vector<2x1xf32>,
    return
  }
}

</mosaic_0001>

<llo_original>
// kernel: choose_model_forward.1
$region0: #{choose_model_forward.1}
  #allocation0 [shape = 'u32[]', space=smem, size = 0x4, offset = 0x4, fixed_abs, tag = 'smem constant byte address 0x4 - core index']
  #allocation1 [shape = 'u32[72,128]{1,0:T(1,128)}', space=vmem, size = 0x9000, scoped, tag = 'internal scratch']
  %s0 = inlined_call_operand.vmem [shape: f32[16,32], index: 0, kind: input, shape index: {}]
  %s1 = inlined_call_operand.vmem [shape: f32[144,128], index: 1, kind: input, shape index: {}]
  %s2 = inlined_call_operand.vmem [shape: f32[8,128], index: 2, kind: input, shape index: {}]
  %s3 = inlined_call_operand.vmem [shape: f32[2,1], index: 3, kind: output, shape index: {}]
  %s4 = sld [smem:[#allocation0]]
  $region22: #{choose_model_forward.1} parent=0
    _
  %s6 = ssub.s32 1, %s4
  %s7 = scalar_select 0, %s6, %s4
  // Predicated region
  $region2: #{choose_model_forward.1} parent=0 // pred_check
    _
  $region3: #{choose_model_forward.1} parent=0 // pred_check_branch
    %9 = sbr.rel (0) target = $region5
  $region4: #{choose_model_forward.1} parent=0 // pred_region
    _
  $region5: #{choose_model_forward.1} parent=0 // pred_fallthru
    _
  // Predicated region
  $region6: #{choose_model_forward.1} parent=0 // pred_check
    _
  $region7: #{choose_model_forward.1} parent=0 // pred_check_branch
    %11 = sbr.rel (0) target = $region9
  $region8: #{choose_model_forward.1} parent=0 // pred_region
    _
  $region9: #{choose_model_forward.1} parent=0 // pred_fallthru
    _
  // Predicated region
  $region10: #{choose_model_forward.1} parent=0 // pred_check
    _
  $region11: #{choose_model_forward.1} parent=0 // pred_check_branch
    %13 = sbr.rel (0) target = $region13
  $region12: #{choose_model_forward.1} parent=0 // pred_region
    _
  $region13: #{choose_model_forward.1} parent=0 // pred_fallthru
    _
  %v14 = vld [vmem:[%s0] sm:$0xff]
  %v15 = vld [vmem:[%s0 + $0x8] sm:$0xff]
  %v16 = vld [vmem:[%s1 + $0x70] sm:$0xff]
  %v17 = vld [vmem:[%s1 + $0x78] sm:$0xff]
  %v18 = vld [vmem:[%s1 + $0x80] sm:$0xff]
  %v19 = vld [vmem:[%s1 + $0x88] sm:$0xff]
  %v20 = vld [vmem:[%s2 + $0x2] sm:$0x1]
  %v21 = vperm.slane %v20, 0
  %23 = vrot.lane.b32.xlu0 %v21, 32
  %v24 = vpop.permute.xlu0 %23
  %vm26 = vcmask 261120
  %v28 = vsel %vm26, %v14, 0
  %v31 = vsel %vm26, %v15, 0
  %33 = vmatpush.msra.mxu0 0.0
  %34 = vmatpush.msra.mxu0 0.0
  %35 = vmatpush.msra.mxu0 0.0
  %36 = vmatpush.msra.mxu0 0.0
  %37 = vmatpush.msra.mxu0 0.0
  %38 = vmatpush.msra.mxu0 0.0
  %39 = vmatpush.msra.mxu0 0.0
  %40 = vmatpush.msra.mxu0 0.0
  %41 = vmatpush.msra.mxu0 0.0
  %42 = vmatpush.msra.mxu0 0.0
  %43 = vmatpush.msra.mxu0 0.0
  %44 = vmatpush.msra.mxu0 0.0
  %45 = vmatpush.msra.mxu0 %v19
  %46 = vmatpush.msra.mxu0 %v18
  %47 = vmatpush.msra.mxu0 %v17
  %48 = vmatpush.msra.mxu0 %v16
  %49 = vmatmul.f32.gmra.mxu0 %v28
  %v50 = vpop.f32.mrf.mxu0
  %v51 = vadd.f32 %v24, %v50
  %52 = vmatmul.f32.gmra.mxu0 %v31
  %v53 = vpop.f32.mrf.mxu0
  %v54 = vadd.f32 %v24, %v53
  %55 = vdwg.mxu0
  %v56 = vld [vmem:[%s1 + $0x50] sm:$0xff]
  %v57 = vld [vmem:[%s1 + $0x58] sm:$0xff]
  %60 = vrot.lane.b32.xlu0 %v56, 96
  %v61 = vpop.permute.xlu0 %60
  %62 = vrot.lane.b32.xlu0 %v57, 96
  %v63 = vpop.permute.xlu0 %62
  %vm64 = vcmask 130048
  %v65 = vsel %vm64, %v61, 0
  %v67 = vsel %vm64, %v63, 0
  %69 = vmatpush.msra.mxu0 0.0
  %70 = vmatpush.msra.mxu0 0.0
  %71 = vmatpush.msra.mxu0 0.0
  %72 = vmatpush.msra.mxu0 0.0
  %73 = vmatpush.msra.mxu0 0.0
  %74 = vmatpush.msra.mxu0 0.0
  %75 = vmatpush.msra.mxu0 0.0
  %76 = vmatpush.msra.mxu0 0.0
  %77 = vmatpush.msra.mxu0 0.0
  %78 = vmatpush.msra.mxu0 0.0
  %79 = vmatpush.msra.mxu0 0.0
  %80 = vmatpush.msra.mxu0 0.0
  %81 = vmatpush.msra.mxu0 0.0
  %82 = vmatpush.msra.mxu0 0.0
  %83 = vmatpush.msra.mxu0 %v54
  %84 = vmatpush.msra.mxu0 %v51
  %85 = vmatmul.f32.gmra.mxu0 %v65
  %v86 = vpop.f32.mrf.mxu0
  %v87 = vadd.f32 0.0, %v86
  %88 = vmatmul.f32.gmra.mxu0 %v67
  %v89 = vpop.f32.mrf.mxu0
  %v90 = vadd.f32 0.0, %v89
  %91 = vdwg.mxu0
  %v92 = vld [vmem:[%s1] sm:$0xff]
  %94 = vrot.lane.b32.xlu0 %v92, 112
  %v95 = vpop.permute.xlu0 %94
  %vm97 = vcmask 64512
  %v99 = vsel %vm97, %v51, 0
  %v102 = vsel %vm97, %v54, 0
  %104 = vmatpush.msra.mxu0 0.0
  %105 = vmatpush.msra.mxu0 0.0
  %106 = vmatpush.msra.mxu0 0.0
  %107 = vmatpush.msra.mxu0 0.0
  %108 = vmatpush.msra.mxu0 0.0
  %109 = vmatpush.msra.mxu0 0.0
  %110 = vmatpush.msra.mxu0 0.0
  %111 = vmatpush.msra.mxu0 0.0
  %112 = vmatpush.msra.mxu0 0.0
  %113 = vmatpush.msra.mxu0 0.0
  %114 = vmatpush.msra.mxu0 0.0
  %115 = vmatpush.msra.mxu0 0.0
  %116 = vmatpush.msra.mxu0 0.0
  %117 = vmatpush.msra.mxu0 0.0
  %118 = vmatpush.msra.mxu0 0.0
  %119 = vmatpush.msra.mxu0 %v95
  %120 = vmatmul.f32.gmra.mxu0 %v99
  %v121 = vpop.f32.mrf.mxu0
  %v122 = vadd.f32 0.0, %v121
  %123 = vmatmul.f32.gmra.mxu0 %v102
  %v124 = vpop.f32.mrf.mxu0
  %v125 = vadd.f32 0.0, %v124
  %126 = vdwg.mxu0
  %v128 = vsel %vm97, %v87, 0
  %v131 = vsel %vm97, %v90, 0
  %133 = vmatpush.msra.mxu0 0.0
  %134 = vmatpush.msra.mxu0 0.0
  %135 = vmatpush.msra.mxu0 0.0
  %136 = vmatpush.msra.mxu0 0.0
  %137 = vmatpush.msra.mxu0 0.0
  %138 = vmatpush.msra.mxu0 0.0
  %139 = vmatpush.msra.mxu0 0.0
  %140 = vmatpush.msra.mxu0 0.0
  %141 = vmatpush.msra.mxu0 0.0
  %142 = vmatpush.msra.mxu0 0.0
  %143 = vmatpush.msra.mxu0 0.0
  %144 = vmatpush.msra.mxu0 0.0
  %145 = vmatpush.msra.mxu0 0.0
  %146 = vmatpush.msra.mxu0 0.0
  %147 = vmatpush.msra.mxu0 0.0
  %148 = vmatpush.msra.mxu0 %v92
  %149 = vmatmul.f32.gmra.mxu0 %v128
  %v150 = vpop.f32.mrf.mxu0
  %v151 = vadd.f32 %v122, %v150
  %152 = vmatmul.f32.gmra.mxu0 %v131
  %v153 = vpop.f32.mrf.mxu0
  %v154 = vadd.f32 %v125, %v153
  %155 = vdwg.mxu0
  %156 = vrot.lane.b32.xlu0 %v56, 80
  %v157 = vpop.permute.xlu0 %156
  %158 = vrot.lane.b32.xlu0 %v57, 80
  %v159 = vpop.permute.xlu0 %158
  %v160 = vsel %vm64, %v157, 0
  %v162 = vsel %vm64, %v159, 0
  %164 = vmatpush.msra.mxu0 0.0
  %165 = vmatpush.msra.mxu0 0.0
  %166 = vmatpush.msra.mxu0 0.0
  %167 = vmatpush.msra.mxu0 0.0
  %168 = vmatpush.msra.mxu0 0.0
  %169 = vmatpush.msra.mxu0 0.0
  %170 = vmatpush.msra.mxu0 0.0
  %171 = vmatpush.msra.mxu0 0.0
  %172 = vmatpush.msra.mxu0 0.0
  %173 = vmatpush.msra.mxu0 0.0
  %174 = vmatpush.msra.mxu0 0.0
  %175 = vmatpush.msra.mxu0 0.0
  %176 = vmatpush.msra.mxu0 0.0
  %177 = vmatpush.msra.mxu0 0.0
  %178 = vmatpush.msra.mxu0 %v54
  %179 = vmatpush.msra.mxu0 %v51
  %180 = vmatmul.f32.gmra.mxu0 %v160
  %v181 = vpop.f32.mrf.mxu0
  %v182 = vadd.f32 0.0, %v181
  %183 = vmatmul.f32.gmra.mxu0 %v162
  %v184 = vpop.f32.mrf.mxu0
  %v185 = vadd.f32 0.0, %v184
  %186 = vdwg.mxu0
  %187 = vrot.lane.b32.xlu0 %v92, 96
  %v188 = vpop.permute.xlu0 %187
  %v191 = vsel %vm97, %v182, 0
  %v194 = vsel %vm97, %v185, 0
  %196 = vmatpush.msra.mxu0 0.0
  %197 = vmatpush.msra.mxu0 0.0
  %198 = vmatpush.msra.mxu0 0.0
  %199 = vmatpush.msra.mxu0 0.0
  %200 = vmatpush.msra.mxu0 0.0
  %201 = vmatpush.msra.mxu0 0.0
  %202 = vmatpush.msra.mxu0 0.0
  %203 = vmatpush.msra.mxu0 0.0
  %204 = vmatpush.msra.mxu0 0.0
  %205 = vmatpush.msra.mxu0 0.0
  %206 = vmatpush.msra.mxu0 0.0
  %207 = vmatpush.msra.mxu0 0.0
  %208 = vmatpush.msra.mxu0 0.0
  %209 = vmatpush.msra.mxu0 0.0
  %210 = vmatpush.msra.mxu0 0.0
  %211 = vmatpush.msra.mxu0 %v188
  %212 = vmatmul.f32.gmra.mxu0 %v191
  %v213 = vpop.f32.mrf.mxu0
  %v214 = vadd.f32 0.0, %v213
  %215 = vmatmul.f32.gmra.mxu0 %v194
  %v216 = vpop.f32.mrf.mxu0
  %v217 = vadd.f32 0.0, %v216
  %218 = vdwg.mxu0
  %v219 = vadd.f32 %v151, %v214
  %v220 = vadd.f32 %v154, %v217
  %v221 = vld [vmem:[%s2] sm:$0x1]
  %v222 = vperm.slane %v221, 0
  %v223 = vadd.f32 %v219, %v222
  %v224 = vadd.f32 %v220, %v222
  %226 = vrot.lane.b32.xlu0 %v222, 112
  %v227 = vpop.permute.xlu0 %226
  %v229 = vmul.f32 %v223, %v227
  %v230 = vmul.f32 %v224, %v227
  %231 = vrot.lane.b32.xlu0 %v222, 16
  %v232 = vpop.permute.xlu0 %231
  %v234 = vadd.f32 %v229, %v232
  %v235 = vadd.f32 %v230, %v232
  %v236 = vmax.f32 %v234, 0.0
  %v237 = vmax.f32 %v235, 0.0
  %v238 = vld [vmem:[%s1 + $0x50] sm:$0xff]
  %240 = vrot.lane.b32.xlu0 %v238, 64
  %v241 = vpop.permute.xlu0 %240
  %v242 = vsel %vm64, %v241, 0
  %244 = vmatpush.msra.mxu0 0.0
  %245 = vmatpush.msra.mxu0 0.0
  %246 = vmatpush.msra.mxu0 0.0
  %247 = vmatpush.msra.mxu0 0.0
  %248 = vmatpush.msra.mxu0 0.0
  %249 = vmatpush.msra.mxu0 0.0
  %250 = vmatpush.msra.mxu0 0.0
  %251 = vmatpush.msra.mxu0 0.0
  %252 = vmatpush.msra.mxu0 0.0
  %253 = vmatpush.msra.mxu0 0.0
  %254 = vmatpush.msra.mxu0 0.0
  %255 = vmatpush.msra.mxu0 0.0
  %256 = vmatpush.msra.mxu0 0.0
  %257 = vmatpush.msra.mxu0 0.0
  %258 = vmatpush.msra.mxu0 %v237
  %259 = vmatpush.msra.mxu0 %v236
  %260 = vmatmul.f32.gmra.mxu0 %v242
  %v261 = vpop.f32.mrf.mxu0
  %v262 = vadd.f32 0.0, %v261
  %263 = vdwg.mxu0
  %v264 = vld [vmem:[%s1] sm:$0xff]
  %v265 = vld [vmem:[%s1 + $0x8] sm:$0xff]
  %266 = vrot.lane.b32.xlu0 %v238, 48
  %v267 = vpop.permute.xlu0 %266
  %v268 = vsel %vm64, %v267, 0
  %270 = vmatpush.msra.mxu0 0.0
  %271 = vmatpush.msra.mxu0 0.0
  %272 = vmatpush.msra.mxu0 0.0
  %273 = vmatpush.msra.mxu0 0.0
  %274 = vmatpush.msra.mxu0 0.0
  %275 = vmatpush.msra.mxu0 0.0
  %276 = vmatpush.msra.mxu0 0.0
  %277 = vmatpush.msra.mxu0 0.0
  %278 = vmatpush.msra.mxu0 0.0
  %279 = vmatpush.msra.mxu0 0.0
  %280 = vmatpush.msra.mxu0 0.0
  %281 = vmatpush.msra.mxu0 0.0
  %282 = vmatpush.msra.mxu0 0.0
  %283 = vmatpush.msra.mxu0 0.0
  %284 = vmatpush.msra.mxu0 %v237
  %285 = vmatpush.msra.mxu0 %v236
  %286 = vmatmul.f32.gmra.mxu0 %v268
  %v287 = vpop.f32.mrf.mxu0
  %v288 = vadd.f32 0.0, %v287
  %289 = vdwg.mxu0
  %292 = vrot.lane.b32.xlu0 %v264, 64
  %v293 = vpop.permute.xlu0 %292
  %294 = vrot.lane.b32.xlu0 %v265, 64
  %v295 = vpop.permute.xlu0 %294
  %v299 = vsel %vm64, %v288, 0
  %301 = vmatpush.msra.mxu0 0.0
  %302 = vmatpush.msra.mxu0 0.0
  %303 = vmatpush.msra.mxu0 0.0
  %304 = vmatpush.msra.mxu0 0.0
  %305 = vmatpush.msra.mxu0 0.0
  %306 = vmatpush.msra.mxu0 0.0
  %307 = vmatpush.msra.mxu0 0.0
  %308 = vmatpush.msra.mxu0 0.0
  %309 = vmatpush.msra.mxu0 0.0
  %310 = vmatpush.msra.mxu0 0.0
  %311 = vmatpush.msra.mxu0 0.0
  %312 = vmatpush.msra.mxu0 0.0
  %313 = vmatpush.msra.mxu0 0.0
  %314 = vmatpush.msra.mxu0 0.0
  %315 = vmatpush.msra.mxu0 %v295
  %316 = vmatpush.msra.mxu0 %v293
  %317 = vmatmul.f32.gmra.mxu0 %v299
  %v318 = vpop.f32.mrf.mxu0
  %v319 = vadd.f32 0.0, %v318
  %320 = vdwg.mxu0
  %321 = vrot.lane.b32.xlu0 %v264, 80
  %v322 = vpop.permute.xlu0 %321
  %323 = vrot.lane.b32.xlu0 %v265, 80
  %v324 = vpop.permute.xlu0 %323
  %v328 = vsel %vm64, %v262, 0
  %330 = vmatpush.msra.mxu0 0.0
  %331 = vmatpush.msra.mxu0 0.0
  %332 = vmatpush.msra.mxu0 0.0
  %333 = vmatpush.msra.mxu0 0.0
  %334 = vmatpush.msra.mxu0 0.0
  %335 = vmatpush.msra.mxu0 0.0
  %336 = vmatpush.msra.mxu0 0.0
  %337 = vmatpush.msra.mxu0 0.0
  %338 = vmatpush.msra.mxu0 0.0
  %339 = vmatpush.msra.mxu0 0.0
  %340 = vmatpush.msra.mxu0 0.0
  %341 = vmatpush.msra.mxu0 0.0
  %342 = vmatpush.msra.mxu0 0.0
  %343 = vmatpush.msra.mxu0 0.0
  %344 = vmatpush.msra.mxu0 %v324
  %345 = vmatpush.msra.mxu0 %v322
  %346 = vmatmul.f32.gmra.mxu0 %v328
  %v347 = vpop.f32.mrf.mxu0
  %v348 = vadd.f32 %v319, %v347
  %349 = vdwg.mxu0
  %350 = vrot.lane.b32.xlu0 %v238, 32
  %v351 = vpop.permute.xlu0 %350
  %v352 = vsel %vm64, %v351, 0
  %354 = vmatpush.msra.mxu0 0.0
  %355 = vmatpush.msra.mxu0 0.0
  %356 = vmatpush.msra.mxu0 0.0
  %357 = vmatpush.msra.mxu0 0.0
  %358 = vmatpush.msra.mxu0 0.0
  %359 = vmatpush.msra.mxu0 0.0
  %360 = vmatpush.msra.mxu0 0.0
  %361 = vmatpush.msra.mxu0 0.0
  %362 = vmatpush.msra.mxu0 0.0
  %363 = vmatpush.msra.mxu0 0.0
  %364 = vmatpush.msra.mxu0 0.0
  %365 = vmatpush.msra.mxu0 0.0
  %366 = vmatpush.msra.mxu0 0.0
  %367 = vmatpush.msra.mxu0 0.0
  %368 = vmatpush.msra.mxu0 %v237
  %369 = vmatpush.msra.mxu0 %v236
  %370 = vmatmul.f32.gmra.mxu0 %v352
  %v371 = vpop.f32.mrf.mxu0
  %v372 = vadd.f32 0.0, %v371
  %373 = vdwg.mxu0
  %374 = vrot.lane.b32.xlu0 %v264, 48
  %v375 = vpop.permute.xlu0 %374
  %376 = vrot.lane.b32.xlu0 %v265, 48
  %v377 = vpop.permute.xlu0 %376
  %v381 = vsel %vm64, %v372, 0
  %383 = vmatpush.msra.mxu0 0.0
  %384 = vmatpush.msra.mxu0 0.0
  %385 = vmatpush.msra.mxu0 0.0
  %386 = vmatpush.msra.mxu0 0.0
  %387 = vmatpush.msra.mxu0 0.0
  %388 = vmatpush.msra.mxu0 0.0
  %389 = vmatpush.msra.mxu0 0.0
  %390 = vmatpush.msra.mxu0 0.0
  %391 = vmatpush.msra.mxu0 0.0
  %392 = vmatpush.msra.mxu0 0.0
  %393 = vmatpush.msra.mxu0 0.0
  %394 = vmatpush.msra.mxu0 0.0
  %395 = vmatpush.msra.mxu0 0.0
  %396 = vmatpush.msra.mxu0 0.0
  %397 = vmatpush.msra.mxu0 %v377
  %398 = vmatpush.msra.mxu0 %v375
  %399 = vmatmul.f32.gmra.mxu0 %v381
  %v400 = vpop.f32.mrf.mxu0
  %v401 = vadd.f32 0.0, %v400
  %402 = vdwg.mxu0
  %v403 = vadd.f32 %v348, %v401
  %v404 = vld [vmem:[%s2 + $0x1] sm:$0x1]
  %v405 = vperm.slane %v404, 0
  %407 = vrot.lane.b32.xlu0 %v405, 48
  %v408 = vpop.permute.xlu0 %407
  %v410 = vadd.f32 %v403, %v408
  %v411 = vmax.f32 %v410, 0.0
  %412 = vrot.lane.b32.xlu0 %v238, 16
  %v413 = vpop.permute.xlu0 %412
  %v414 = vsel %vm97, %v413, 0
  %416 = vmatpush.msra.mxu0 0.0
  %417 = vmatpush.msra.mxu0 0.0
  %418 = vmatpush.msra.mxu0 0.0
  %419 = vmatpush.msra.mxu0 0.0
  %420 = vmatpush.msra.mxu0 0.0
  %421 = vmatpush.msra.mxu0 0.0
  %422 = vmatpush.msra.mxu0 0.0
  %423 = vmatpush.msra.mxu0 0.0
  %424 = vmatpush.msra.mxu0 0.0
  %425 = vmatpush.msra.mxu0 0.0
  %426 = vmatpush.msra.mxu0 0.0
  %427 = vmatpush.msra.mxu0 0.0
  %428 = vmatpush.msra.mxu0 0.0
  %429 = vmatpush.msra.mxu0 0.0
  %430 = vmatpush.msra.mxu0 0.0
  %431 = vmatpush.msra.mxu0 %v411
  %432 = vmatmul.f32.gmra.mxu0 %v414
  %v433 = vpop.f32.mrf.mxu0
  %v434 = vadd.f32 0.0, %v433
  %435 = vdwg.mxu0
  %436 = vrot.lane.b32.xlu0 %v264, 16
  %v437 = vpop.permute.xlu0 %436
  %438 = vrot.lane.b32.xlu0 %v265, 16
  %v439 = vpop.permute.xlu0 %438
  %v443 = vsel %vm64, %v411, 0
  %445 = vmatpush.msra.mxu0 0.0
  %446 = vmatpush.msra.mxu0 0.0
  %447 = vmatpush.msra.mxu0 0.0
  %448 = vmatpush.msra.mxu0 0.0
  %449 = vmatpush.msra.mxu0 0.0
  %450 = vmatpush.msra.mxu0 0.0
  %451 = vmatpush.msra.mxu0 0.0
  %452 = vmatpush.msra.mxu0 0.0
  %453 = vmatpush.msra.mxu0 0.0
  %454 = vmatpush.msra.mxu0 0.0
  %455 = vmatpush.msra.mxu0 0.0
  %456 = vmatpush.msra.mxu0 0.0
  %457 = vmatpush.msra.mxu0 0.0
  %458 = vmatpush.msra.mxu0 0.0
  %459 = vmatpush.msra.mxu0 %v439
  %460 = vmatpush.msra.mxu0 %v437
  %461 = vmatmul.f32.gmra.mxu0 %v443
  %v462 = vpop.f32.mrf.mxu0
  %v463 = vadd.f32 0.0, %v462
  %464 = vdwg.mxu0
  %465 = vrot.lane.b32.xlu0 %v264, 32
  %v466 = vpop.permute.xlu0 %465
  %467 = vrot.lane.b32.xlu0 %v265, 32
  %v468 = vpop.permute.xlu0 %467
  %v472 = vsel %vm64, %v434, 0
  %474 = vmatpush.msra.mxu0 0.0
  %475 = vmatpush.msra.mxu0 0.0
  %476 = vmatpush.msra.mxu0 0.0
  %477 = vmatpush.msra.mxu0 0.0
  %478 = vmatpush.msra.mxu0 0.0
  %479 = vmatpush.msra.mxu0 0.0
  %480 = vmatpush.msra.mxu0 0.0
  %481 = vmatpush.msra.mxu0 0.0
  %482 = vmatpush.msra.mxu0 0.0
  %483 = vmatpush.msra.mxu0 0.0
  %484 = vmatpush.msra.mxu0 0.0
  %485 = vmatpush.msra.mxu0 0.0
  %486 = vmatpush.msra.mxu0 0.0
  %487 = vmatpush.msra.mxu0 0.0
  %488 = vmatpush.msra.mxu0 %v468
  %489 = vmatpush.msra.mxu0 %v466
  %490 = vmatmul.f32.gmra.mxu0 %v472
  %v491 = vpop.f32.mrf.mxu0
  %v492 = vadd.f32 %v463, %v491
  %493 = vdwg.mxu0
  %v494 = vld [vmem:[%s1 + $0x60] sm:$0xff]
  %v496 = vsel %vm97, %v494, 0
  %498 = vmatpush.msra.mxu0 0.0
  %499 = vmatpush.msra.mxu0 0.0
  %500 = vmatpush.msra.mxu0 0.0
  %501 = vmatpush.msra.mxu0 0.0
  %502 = vmatpush.msra.mxu0 0.0
  %503 = vmatpush.msra.mxu0 0.0
  %504 = vmatpush.msra.mxu0 0.0
  %505 = vmatpush.msra.mxu0 0.0
  %506 = vmatpush.msra.mxu0 0.0
  %507 = vmatpush.msra.mxu0 0.0
  %508 = vmatpush.msra.mxu0 0.0
  %509 = vmatpush.msra.mxu0 0.0
  %510 = vmatpush.msra.mxu0 0.0
  %511 = vmatpush.msra.mxu0 0.0
  %512 = vmatpush.msra.mxu0 0.0
  %513 = vmatpush.msra.mxu0 %v411
  %514 = vmatmul.f32.gmra.mxu0 %v496
  %v515 = vpop.f32.mrf.mxu0
  %v516 = vadd.f32 0.0, %v515
  %517 = vdwg.mxu0
  %v518 = vld [vmem:[%s1 + $0x10] sm:$0xff]
  %v519 = vld [vmem:[%s1 + $0x18] sm:$0xff]
  %v521 = vsel %vm64, %v516, 0
  %523 = vmatpush.msra.mxu0 0.0
  %524 = vmatpush.msra.mxu0 0.0
  %525 = vmatpush.msra.mxu0 0.0
  %526 = vmatpush.msra.mxu0 0.0
  %527 = vmatpush.msra.mxu0 0.0
  %528 = vmatpush.msra.mxu0 0.0
  %529 = vmatpush.msra.mxu0 0.0
  %530 = vmatpush.msra.mxu0 0.0
  %531 = vmatpush.msra.mxu0 0.0
  %532 = vmatpush.msra.mxu0 0.0
  %533 = vmatpush.msra.mxu0 0.0
  %534 = vmatpush.msra.mxu0 0.0
  %535 = vmatpush.msra.mxu0 0.0
  %536 = vmatpush.msra.mxu0 0.0
  %537 = vmatpush.msra.mxu0 %v519
  %538 = vmatpush.msra.mxu0 %v518
  %539 = vmatmul.f32.gmra.mxu0 %v521
  %v540 = vpop.f32.mrf.mxu0
  %v541 = vadd.f32 0.0, %v540
  %542 = vdwg.mxu0
  %v543 = vadd.f32 %v492, %v541
  %544 = vmatpush.msra.mxu0 0.0
  %545 = vmatpush.msra.mxu0 0.0
  %546 = vmatpush.msra.mxu0 0.0
  %547 = vmatpush.msra.mxu0 0.0
  %548 = vmatpush.msra.mxu0 0.0
  %549 = vmatpush.msra.mxu0 0.0
  %550 = vmatpush.msra.mxu0 0.0
  %551 = vmatpush.msra.mxu0 0.0
  %552 = vmatpush.msra.mxu0 0.0
  %553 = vmatpush.msra.mxu0 0.0
  %554 = vmatpush.msra.mxu0 0.0
  %555 = vmatpush.msra.mxu0 0.0
  %556 = vmatpush.msra.mxu0 0.0
  %557 = vmatpush.msra.mxu0 0.0
  %558 = vmatpush.msra.mxu0 %v224
  %559 = vmatpush.msra.mxu0 %v223
  %560 = vmatmul.f32.gmra.mxu0 %v268
  %v561 = vpop.f32.mrf.mxu0
  %v562 = vadd.f32 0.0, %v561
  %563 = vdwg.mxu0
  %v564 = vld [vmem:[%s1 + $0x40] sm:$0xff]
  %v565 = vld [vmem:[%s1 + $0x48] sm:$0xff]
  %568 = vrot.lane.b32.xlu0 %v564, 16
  %v569 = vpop.permute.xlu0 %568
  %570 = vrot.lane.b32.xlu0 %v565, 16
  %v571 = vpop.permute.xlu0 %570
  %574 = vrot.lane.b32.xlu0 %v21, 80
  %v575 = vpop.permute.xlu0 %574
  %v578 = vsel %vm64, %v562, 0
  %580 = vmatpush.msra.mxu0 0.0
  %581 = vmatpush.msra.mxu0 0.0
  %582 = vmatpush.msra.mxu0 0.0
  %583 = vmatpush.msra.mxu0 0.0
  %584 = vmatpush.msra.mxu0 0.0
  %585 = vmatpush.msra.mxu0 0.0
  %586 = vmatpush.msra.mxu0 0.0
  %587 = vmatpush.msra.mxu0 0.0
  %588 = vmatpush.msra.mxu0 0.0
  %589 = vmatpush.msra.mxu0 0.0
  %590 = vmatpush.msra.mxu0 0.0
  %591 = vmatpush.msra.mxu0 0.0
  %592 = vmatpush.msra.mxu0 0.0
  %593 = vmatpush.msra.mxu0 0.0
  %594 = vmatpush.msra.mxu0 %v571
  %595 = vmatpush.msra.mxu0 %v569
  %596 = vmatmul.f32.gmra.mxu0 %v578
  %v597 = vpop.f32.mrf.mxu0
  %v598 = vadd.f32 %v575, %v597
  %599 = vdwg.mxu0
  %v600 = vadd.f32 %v543, %v598
  %601 = vrot.lane.b32.xlu0 %v222, 96
  %v602 = vpop.permute.xlu0 %601
  %v604 = vmul.f32 %v600, %v602
  %v605 = vadd.f32 %v604, %v405
  %v606 = vmax.f32 %v605, 0.0
  %607 = vmatpush.msra.mxu0 0.0
  %608 = vmatpush.msra.mxu0 0.0
  %609 = vmatpush.msra.mxu0 0.0
  %610 = vmatpush.msra.mxu0 0.0
  %611 = vmatpush.msra.mxu0 0.0
  %612 = vmatpush.msra.mxu0 0.0
  %613 = vmatpush.msra.mxu0 0.0
  %614 = vmatpush.msra.mxu0 0.0
  %615 = vmatpush.msra.mxu0 0.0
  %616 = vmatpush.msra.mxu0 0.0
  %617 = vmatpush.msra.mxu0 0.0
  %618 = vmatpush.msra.mxu0 0.0
  %619 = vmatpush.msra.mxu0 0.0
  %620 = vmatpush.msra.mxu0 0.0
  %621 = vmatpush.msra.mxu0 0.0
  %622 = vmatpush.msra.mxu0 %v606
  %623 = vmatmul.f32.gmra.mxu0 %v414
  %v624 = vpop.f32.mrf.mxu0
  %v625 = vadd.f32 0.0, %v624
  %626 = vdwg.mxu0
  %629 = vrot.lane.b32.xlu0 %v518, 96
  %v630 = vpop.permute.xlu0 %629
  %631 = vrot.lane.b32.xlu0 %v519, 96
  %v632 = vpop.permute.xlu0 %631
  %v636 = vsel %vm64, %v606, 0
  %638 = vmatpush.msra.mxu0 0.0
  %639 = vmatpush.msra.mxu0 0.0
  %640 = vmatpush.msra.mxu0 0.0
  %641 = vmatpush.msra.mxu0 0.0
  %642 = vmatpush.msra.mxu0 0.0
  %643 = vmatpush.msra.mxu0 0.0
  %644 = vmatpush.msra.mxu0 0.0
  %645 = vmatpush.msra.mxu0 0.0
  %646 = vmatpush.msra.mxu0 0.0
  %647 = vmatpush.msra.mxu0 0.0
  %648 = vmatpush.msra.mxu0 0.0
  %649 = vmatpush.msra.mxu0 0.0
  %650 = vmatpush.msra.mxu0 0.0
  %651 = vmatpush.msra.mxu0 0.0
  %652 = vmatpush.msra.mxu0 %v632
  %653 = vmatpush.msra.mxu0 %v630
  %654 = vmatmul.f32.gmra.mxu0 %v636
  %v655 = vpop.f32.mrf.mxu0
  %v656 = vadd.f32 0.0, %v655
  %657 = vdwg.mxu0
  %658 = vrot.lane.b32.xlu0 %v518, 112
  %v659 = vpop.permute.xlu0 %658
  %660 = vrot.lane.b32.xlu0 %v519, 112
  %v661 = vpop.permute.xlu0 %660
  %v665 = vsel %vm64, %v625, 0
  %667 = vmatpush.msra.mxu0 0.0
  %668 = vmatpush.msra.mxu0 0.0
  %669 = vmatpush.msra.mxu0 0.0
  %670 = vmatpush.msra.mxu0 0.0
  %671 = vmatpush.msra.mxu0 0.0
  %672 = vmatpush.msra.mxu0 0.0
  %673 = vmatpush.msra.mxu0 0.0
  %674 = vmatpush.msra.mxu0 0.0
  %675 = vmatpush.msra.mxu0 0.0
  %676 = vmatpush.msra.mxu0 0.0
  %677 = vmatpush.msra.mxu0 0.0
  %678 = vmatpush.msra.mxu0 0.0
  %679 = vmatpush.msra.mxu0 0.0
  %680 = vmatpush.msra.mxu0 0.0
  %681 = vmatpush.msra.mxu0 %v661
  %682 = vmatpush.msra.mxu0 %v659
  %683 = vmatmul.f32.gmra.mxu0 %v665
  %v684 = vpop.f32.mrf.mxu0
  %v685 = vadd.f32 %v656, %v684
  %686 = vdwg.mxu0
  %687 = vmatpush.msra.mxu0 0.0
  %688 = vmatpush.msra.mxu0 0.0
  %689 = vmatpush.msra.mxu0 0.0
  %690 = vmatpush.msra.mxu0 0.0
  %691 = vmatpush.msra.mxu0 0.0
  %692 = vmatpush.msra.mxu0 0.0
  %693 = vmatpush.msra.mxu0 0.0
  %694 = vmatpush.msra.mxu0 0.0
  %695 = vmatpush.msra.mxu0 0.0
  %696 = vmatpush.msra.mxu0 0.0
  %697 = vmatpush.msra.mxu0 0.0
  %698 = vmatpush.msra.mxu0 0.0
  %699 = vmatpush.msra.mxu0 0.0
  %700 = vmatpush.msra.mxu0 0.0
  %701 = vmatpush.msra.mxu0 0.0
  %702 = vmatpush.msra.mxu0 %v606
  %703 = vmatmul.f32.gmra.mxu0 %v496
  %v704 = vpop.f32.mrf.mxu0
  %v705 = vadd.f32 0.0, %v704
  %706 = vdwg.mxu0
  %707 = vrot.lane.b32.xlu0 %v518, 80
  %v708 = vpop.permute.xlu0 %707
  %709 = vrot.lane.b32.xlu0 %v519, 80
  %v710 = vpop.permute.xlu0 %709
  %v714 = vsel %vm64, %v705, 0
  %716 = vmatpush.msra.mxu0 0.0
  %717 = vmatpush.msra.mxu0 0.0
  %718 = vmatpush.msra.mxu0 0.0
  %719 = vmatpush.msra.mxu0 0.0
  %720 = vmatpush.msra.mxu0 0.0
  %721 = vmatpush.msra.mxu0 0.0
  %722 = vmatpush.msra.mxu0 0.0
  %723 = vmatpush.msra.mxu0 0.0
  %724 = vmatpush.msra.mxu0 0.0
  %725 = vmatpush.msra.mxu0 0.0
  %726 = vmatpush.msra.mxu0 0.0
  %727 = vmatpush.msra.mxu0 0.0
  %728 = vmatpush.msra.mxu0 0.0
  %729 = vmatpush.msra.mxu0 0.0
  %730 = vmatpush.msra.mxu0 %v710
  %731 = vmatpush.msra.mxu0 %v708
  %732 = vmatmul.f32.gmra.mxu0 %v714
  %v733 = vpop.f32.mrf.mxu0
  %v734 = vadd.f32 0.0, %v733
  %735 = vdwg.mxu0
  %v736 = vadd.f32 %v685, %v734
  %737 = vrot.lane.b32.xlu0 %v405, 32
  %v738 = vpop.permute.xlu0 %737
  %v740 = vadd.f32 %v736, %v738
  %v741 = vmax.f32 %v740, 0.0
  %742 = vmatpush.msra.mxu0 0.0
  %743 = vmatpush.msra.mxu0 0.0
  %744 = vmatpush.msra.mxu0 0.0
  %745 = vmatpush.msra.mxu0 0.0
  %746 = vmatpush.msra.mxu0 0.0
  %747 = vmatpush.msra.mxu0 0.0
  %748 = vmatpush.msra.mxu0 0.0
  %749 = vmatpush.msra.mxu0 0.0
  %750 = vmatpush.msra.mxu0 0.0
  %751 = vmatpush.msra.mxu0 0.0
  %752 = vmatpush.msra.mxu0 0.0
  %753 = vmatpush.msra.mxu0 0.0
  %754 = vmatpush.msra.mxu0 0.0
  %755 = vmatpush.msra.mxu0 0.0
  %756 = vmatpush.msra.mxu0 0.0
  %757 = vmatpush.msra.mxu0 %v741
  %758 = vmatmul.f32.gmra.mxu0 %v414
  %v759 = vpop.f32.mrf.mxu0
  %v760 = vadd.f32 0.0, %v759
  %761 = vdwg.mxu0
  %762 = vrot.lane.b32.xlu0 %v518, 48
  %v763 = vpop.permute.xlu0 %762
  %764 = vrot.lane.b32.xlu0 %v519, 48
  %v765 = vpop.permute.xlu0 %764
  %v769 = vsel %vm64, %v741, 0
  %771 = vmatpush.msra.mxu0 0.0
  %772 = vmatpush.msra.mxu0 0.0
  %773 = vmatpush.msra.mxu0 0.0
  %774 = vmatpush.msra.mxu0 0.0
  %775 = vmatpush.msra.mxu0 0.0
  %776 = vmatpush.msra.mxu0 0.0
  %777 = vmatpush.msra.mxu0 0.0
  %778 = vmatpush.msra.mxu0 0.0
  %779 = vmatpush.msra.mxu0 0.0
  %780 = vmatpush.msra.mxu0 0.0
  %781 = vmatpush.msra.mxu0 0.0
  %782 = vmatpush.msra.mxu0 0.0
  %783 = vmatpush.msra.mxu0 0.0
  %784 = vmatpush.msra.mxu0 0.0
  %785 = vmatpush.msra.mxu0 %v765
  %786 = vmatpush.msra.mxu0 %v763
  %787 = vmatmul.f32.gmra.mxu0 %v769
  %v788 = vpop.f32.mrf.mxu0
  %v789 = vadd.f32 0.0, %v788
  %790 = vdwg.mxu0
  %791 = vrot.lane.b32.xlu0 %v518, 64
  %v792 = vpop.permute.xlu0 %791
  %793 = vrot.lane.b32.xlu0 %v519, 64
  %v794 = vpop.permute.xlu0 %793
  %v798 = vsel %vm64, %v760, 0
  %800 = vmatpush.msra.mxu0 0.0
  %801 = vmatpush.msra.mxu0 0.0
  %802 = vmatpush.msra.mxu0 0.0
  %803 = vmatpush.msra.mxu0 0.0
  %804 = vmatpush.msra.mxu0 0.0
  %805 = vmatpush.msra.mxu0 0.0
  %806 = vmatpush.msra.mxu0 0.0
  %807 = vmatpush.msra.mxu0 0.0
  %808 = vmatpush.msra.mxu0 0.0
  %809 = vmatpush.msra.mxu0 0.0
  %810 = vmatpush.msra.mxu0 0.0
  %811 = vmatpush.msra.mxu0 0.0
  %812 = vmatpush.msra.mxu0 0.0
  %813 = vmatpush.msra.mxu0 0.0
  %814 = vmatpush.msra.mxu0 %v794
  %815 = vmatpush.msra.mxu0 %v792
  %816 = vmatmul.f32.gmra.mxu0 %v798
  %v817 = vpop.f32.mrf.mxu0
  %v818 = vadd.f32 %v789, %v817
  %819 = vdwg.mxu0
  %820 = vmatpush.msra.mxu0 0.0
  %821 = vmatpush.msra.mxu0 0.0
  %822 = vmatpush.msra.mxu0 0.0
  %823 = vmatpush.msra.mxu0 0.0
  %824 = vmatpush.msra.mxu0 0.0
  %825 = vmatpush.msra.mxu0 0.0
  %826 = vmatpush.msra.mxu0 0.0
  %827 = vmatpush.msra.mxu0 0.0
  %828 = vmatpush.msra.mxu0 0.0
  %829 = vmatpush.msra.mxu0 0.0
  %830 = vmatpush.msra.mxu0 0.0
  %831 = vmatpush.msra.mxu0 0.0
  %832 = vmatpush.msra.mxu0 0.0
  %833 = vmatpush.msra.mxu0 0.0
  %834 = vmatpush.msra.mxu0 0.0
  %835 = vmatpush.msra.mxu0 %v741
  %836 = vmatmul.f32.gmra.mxu0 %v496
  %v837 = vpop.f32.mrf.mxu0
  %v838 = vadd.f32 0.0, %v837
  %839 = vdwg.mxu0
  %840 = vrot.lane.b32.xlu0 %v518, 32
  %v841 = vpop.permute.xlu0 %840
  %842 = vrot.lane.b32.xlu0 %v519, 32
  %v843 = vpop.permute.xlu0 %842
  %v847 = vsel %vm64, %v838, 0
  %849 = vmatpush.msra.mxu0 0.0
  %850 = vmatpush.msra.mxu0 0.0
  %851 = vmatpush.msra.mxu0 0.0
  %852 = vmatpush.msra.mxu0 0.0
  %853 = vmatpush.msra.mxu0 0.0
  %854 = vmatpush.msra.mxu0 0.0
  %855 = vmatpush.msra.mxu0 0.0
  %856 = vmatpush.msra.mxu0 0.0
  %857 = vmatpush.msra.mxu0 0.0
  %858 = vmatpush.msra.mxu0 0.0
  %859 = vmatpush.msra.mxu0 0.0
  %860 = vmatpush.msra.mxu0 0.0
  %861 = vmatpush.msra.mxu0 0.0
  %862 = vmatpush.msra.mxu0 0.0
  %863 = vmatpush.msra.mxu0 %v843
  %864 = vmatpush.msra.mxu0 %v841
  %865 = vmatmul.f32.gmra.mxu0 %v847
  %v866 = vpop.f32.mrf.mxu0
  %v867 = vadd.f32 0.0, %v866
  %868 = vdwg.mxu0
  %v869 = vadd.f32 %v818, %v867
  %v870 = vadd.f32 %v869, %v600
  %871 = vrot.lane.b32.xlu0 %v222, 80
  %v872 = vpop.permute.xlu0 %871
  %v874 = vmul.f32 %v870, %v872
  %875 = vrot.lane.b32.xlu0 %v405, 112
  %v876 = vpop.permute.xlu0 %875
  %v878 = vadd.f32 %v874, %v876
  %v879 = vmax.f32 %v878, 0.0
  %v880 = vld [vmem:[%s1 + $0x60] sm:$0xf]
  %882 = vrot.lane.b32.xlu0 %v880, 112
  %v883 = vpop.permute.xlu0 %882
  %v884 = vsel %vm97, %v883, 0
  %886 = vmatpush.msra.mxu0 0.0
  %887 = vmatpush.msra.mxu0 0.0
  %888 = vmatpush.msra.mxu0 0.0
  %889 = vmatpush.msra.mxu0 0.0
  %890 = vmatpush.msra.mxu0 0.0
  %891 = vmatpush.msra.mxu0 0.0
  %892 = vmatpush.msra.mxu0 0.0
  %893 = vmatpush.msra.mxu0 0.0
  %894 = vmatpush.msra.mxu0 0.0
  %895 = vmatpush.msra.mxu0 0.0
  %896 = vmatpush.msra.mxu0 0.0
  %897 = vmatpush.msra.mxu0 0.0
  %898 = vmatpush.msra.mxu0 0.0
  %899 = vmatpush.msra.mxu0 0.0
  %900 = vmatpush.msra.mxu0 0.0
  %901 = vmatpush.msra.mxu0 %v879
  %902 = vmatmul.f32.gmra.mxu0 %v884
  %v903 = vpop.f32.mrf.mxu0
  %v904 = vadd.f32 0.0, %v903
  %905 = vdwg.mxu0
  %906 = vrot.lane.b32.xlu0 %v880, 96
  %v907 = vpop.permute.xlu0 %906
  %v908 = vsel %vm97, %v907, 0
  %910 = vmatpush.msra.mxu0 0.0
  %911 = vmatpush.msra.mxu0 0.0
  %912 = vmatpush.msra.mxu0 0.0
  %913 = vmatpush.msra.mxu0 0.0
  %914 = vmatpush.msra.mxu0 0.0
  %915 = vmatpush.msra.mxu0 0.0
  %916 = vmatpush.msra.mxu0 0.0
  %917 = vmatpush.msra.mxu0 0.0
  %918 = vmatpush.msra.mxu0 0.0
  %919 = vmatpush.msra.mxu0 0.0
  %920 = vmatpush.msra.mxu0 0.0
  %921 = vmatpush.msra.mxu0 0.0
  %922 = vmatpush.msra.mxu0 0.0
  %923 = vmatpush.msra.mxu0 0.0
  %924 = vmatpush.msra.mxu0 0.0
  %925 = vmatpush.msra.mxu0 %v879
  %926 = vmatmul.f32.gmra.mxu0 %v908
  %v927 = vpop.f32.mrf.mxu0
  %v928 = vadd.f32 0.0, %v927
  %929 = vdwg.mxu0
  %v930 = vld [vmem:[%s1 + $0x20] sm:$0xff]
  %v931 = vld [vmem:[%s1 + $0x28] sm:$0xff]
  %v933 = vsel %vm64, %v928, 0
  %935 = vmatpush.msra.mxu0 0.0
  %936 = vmatpush.msra.mxu0 0.0
  %937 = vmatpush.msra.mxu0 0.0
  %938 = vmatpush.msra.mxu0 0.0
  %939 = vmatpush.msra.mxu0 0.0
  %940 = vmatpush.msra.mxu0 0.0
  %941 = vmatpush.msra.mxu0 0.0
  %942 = vmatpush.msra.mxu0 0.0
  %943 = vmatpush.msra.mxu0 0.0
  %944 = vmatpush.msra.mxu0 0.0
  %945 = vmatpush.msra.mxu0 0.0
  %946 = vmatpush.msra.mxu0 0.0
  %947 = vmatpush.msra.mxu0 0.0
  %948 = vmatpush.msra.mxu0 0.0
  %949 = vmatpush.msra.mxu0 %v931
  %950 = vmatpush.msra.mxu0 %v930
  %951 = vmatmul.f32.gmra.mxu0 %v933
  %v952 = vpop.f32.mrf.mxu0
  %v953 = vadd.f32 0.0, %v952
  %954 = vdwg.mxu0
  %955 = vrot.lane.b32.xlu0 %v518, 16
  %v956 = vpop.permute.xlu0 %955
  %957 = vrot.lane.b32.xlu0 %v519, 16
  %v958 = vpop.permute.xlu0 %957
  %v962 = vsel %vm64, %v904, 0
  %964 = vmatpush.msra.mxu0 0.0
  %965 = vmatpush.msra.mxu0 0.0
  %966 = vmatpush.msra.mxu0 0.0
  %967 = vmatpush.msra.mxu0 0.0
  %968 = vmatpush.msra.mxu0 0.0
  %969 = vmatpush.msra.mxu0 0.0
  %970 = vmatpush.msra.mxu0 0.0
  %971 = vmatpush.msra.mxu0 0.0
  %972 = vmatpush.msra.mxu0 0.0
  %973 = vmatpush.msra.mxu0 0.0
  %974 = vmatpush.msra.mxu0 0.0
  %975 = vmatpush.msra.mxu0 0.0
  %976 = vmatpush.msra.mxu0 0.0
  %977 = vmatpush.msra.mxu0 0.0
  %978 = vmatpush.msra.mxu0 %v958
  %979 = vmatpush.msra.mxu0 %v956
  %980 = vmatmul.f32.gmra.mxu0 %v962
  %v981 = vpop.f32.mrf.mxu0
  %v982 = vadd.f32 %v953, %v981
  %983 = vdwg.mxu0
  %984 = vrot.lane.b32.xlu0 %v880, 80
  %v985 = vpop.permute.xlu0 %984
  %v986 = vsel %vm97, %v985, 0
  %988 = vmatpush.msra.mxu0 0.0
  %989 = vmatpush.msra.mxu0 0.0
  %990 = vmatpush.msra.mxu0 0.0
  %991 = vmatpush.msra.mxu0 0.0
  %992 = vmatpush.msra.mxu0 0.0
  %993 = vmatpush.msra.mxu0 0.0
  %994 = vmatpush.msra.mxu0 0.0
  %995 = vmatpush.msra.mxu0 0.0
  %996 = vmatpush.msra.mxu0 0.0
  %997 = vmatpush.msra.mxu0 0.0
  %998 = vmatpush.msra.mxu0 0.0
  %999 = vmatpush.msra.mxu0 0.0
  %1000 = vmatpush.msra.mxu0 0.0
  %1001 = vmatpush.msra.mxu0 0.0
  %1002 = vmatpush.msra.mxu0 0.0
  %1003 = vmatpush.msra.mxu0 %v879
  %1004 = vmatmul.f32.gmra.mxu0 %v986
  %v1005 = vpop.f32.mrf.mxu0
  %v1006 = vadd.f32 0.0, %v1005
  %1007 = vdwg.mxu0
  %1010 = vrot.lane.b32.xlu0 %v930, 112
  %v1011 = vpop.permute.xlu0 %1010
  %1012 = vrot.lane.b32.xlu0 %v931, 112
  %v1013 = vpop.permute.xlu0 %1012
  %v1017 = vsel %vm64, %v1006, 0
  %1019 = vmatpush.msra.mxu0 0.0
  %1020 = vmatpush.msra.mxu0 0.0
  %1021 = vmatpush.msra.mxu0 0.0
  %1022 = vmatpush.msra.mxu0 0.0
  %1023 = vmatpush.msra.mxu0 0.0
  %1024 = vmatpush.msra.mxu0 0.0
  %1025 = vmatpush.msra.mxu0 0.0
  %1026 = vmatpush.msra.mxu0 0.0
  %1027 = vmatpush.msra.mxu0 0.0
  %1028 = vmatpush.msra.mxu0 0.0
  %1029 = vmatpush.msra.mxu0 0.0
  %1030 = vmatpush.msra.mxu0 0.0
  %1031 = vmatpush.msra.mxu0 0.0
  %1032 = vmatpush.msra.mxu0 0.0
  %1033 = vmatpush.msra.mxu0 %v1013
  %1034 = vmatpush.msra.mxu0 %v1011
  %1035 = vmatmul.f32.gmra.mxu0 %v1017
  %v1036 = vpop.f32.mrf.mxu0
  %v1037 = vadd.f32 0.0, %v1036
  %1038 = vdwg.mxu0
  %v1039 = vadd.f32 %v982, %v1037
  %1040 = vrot.lane.b32.xlu0 %v405, 16
  %v1041 = vpop.permute.xlu0 %1040
  %v1043 = vadd.f32 %v1039, %v1041
  %v1044 = vmax.f32 %v1043, 0.0
  %1045 = vrot.lane.b32.xlu0 %v880, 64
  %v1046 = vpop.permute.xlu0 %1045
  %vm1047 = vcmask 31744
  %v1048 = vsel %vm1047, %v1046, 0
  %vm1050 = vcmask 1043456
  %v1052 = vsel %vm1050, %v1044, 0
  %1054 = vmatpush.msra.mxu0 0.0
  %1055 = vmatpush.msra.mxu0 0.0
  %1056 = vmatpush.msra.mxu0 0.0
  %1057 = vmatpush.msra.mxu0 0.0
  %1058 = vmatpush.msra.mxu0 0.0
  %1059 = vmatpush.msra.mxu0 0.0
  %1060 = vmatpush.msra.mxu0 0.0
  %1061 = vmatpush.msra.mxu0 0.0
  %1062 = vmatpush.msra.mxu0 0.0
  %1063 = vmatpush.msra.mxu0 0.0
  %1064 = vmatpush.msra.mxu0 0.0
  %1065 = vmatpush.msra.mxu0 0.0
  %1066 = vmatpush.msra.mxu0 0.0
  %1067 = vmatpush.msra.mxu0 0.0
  %1068 = vmatpush.msra.mxu0 0.0
  %1069 = vmatpush.msra.mxu0 %v1052
  %1070 = vmatmul.f32.gmra.mxu0 %v1048
  %v1071 = vpop.f32.mrf.mxu0
  %v1072 = vadd.f32 0.0, %v1071
  %1073 = vdwg.mxu0
  %1074 = vrot.lane.b32.xlu0 %v930, 80
  %v1075 = vpop.permute.xlu0 %1074
  %1076 = vrot.lane.b32.xlu0 %v931, 80
  %v1077 = vpop.permute.xlu0 %1076
  %v1080 = vsel %vm64, %v1044, 0
  %1082 = vmatpush.msra.mxu0 0.0
  %1083 = vmatpush.msra.mxu0 0.0
  %1084 = vmatpush.msra.mxu0 0.0
  %1085 = vmatpush.msra.mxu0 0.0
  %1086 = vmatpush.msra.mxu0 0.0
  %1087 = vmatpush.msra.mxu0 0.0
  %1088 = vmatpush.msra.mxu0 0.0
  %1089 = vmatpush.msra.mxu0 0.0
  %1090 = vmatpush.msra.mxu0 0.0
  %1091 = vmatpush.msra.mxu0 0.0
  %1092 = vmatpush.msra.mxu0 0.0
  %1093 = vmatpush.msra.mxu0 0.0
  %1094 = vmatpush.msra.mxu0 0.0
  %1095 = vmatpush.msra.mxu0 0.0
  %1096 = vmatpush.msra.mxu0 %v1077
  %1097 = vmatpush.msra.mxu0 %v1075
  %1098 = vmatmul.f32.gmra.mxu0 %v1080
  %v1099 = vpop.f32.mrf.mxu0
  %v1100 = vadd.f32 0.0, %v1099
  %1101 = vdwg.mxu0
  %1102 = vrot.lane.b32.xlu0 %v930, 96
  %v1103 = vpop.permute.xlu0 %1102
  %1104 = vrot.lane.b32.xlu0 %v931, 96
  %v1105 = vpop.permute.xlu0 %1104
  %v1109 = vsel %vm64, %v1072, 0
  %1111 = vmatpush.msra.mxu0 0.0
  %1112 = vmatpush.msra.mxu0 0.0
  %1113 = vmatpush.msra.mxu0 0.0
  %1114 = vmatpush.msra.mxu0 0.0
  %1115 = vmatpush.msra.mxu0 0.0
  %1116 = vmatpush.msra.mxu0 0.0
  %1117 = vmatpush.msra.mxu0 0.0
  %1118 = vmatpush.msra.mxu0 0.0
  %1119 = vmatpush.msra.mxu0 0.0
  %1120 = vmatpush.msra.mxu0 0.0
  %1121 = vmatpush.msra.mxu0 0.0
  %1122 = vmatpush.msra.mxu0 0.0
  %1123 = vmatpush.msra.mxu0 0.0
  %1124 = vmatpush.msra.mxu0 0.0
  %1125 = vmatpush.msra.mxu0 %v1105
  %1126 = vmatpush.msra.mxu0 %v1103
  %1127 = vmatmul.f32.gmra.mxu0 %v1109
  %v1128 = vpop.f32.mrf.mxu0
  %v1129 = vadd.f32 %v1100, %v1128
  %1130 = vdwg.mxu0
  %1131 = vrot.lane.b32.xlu0 %v880, 48
  %v1132 = vpop.permute.xlu0 %1131
  %v1133 = vsel %vm1047, %v1132, 0
  %1135 = vmatpush.msra.mxu0 0.0
  %1136 = vmatpush.msra.mxu0 0.0
  %1137 = vmatpush.msra.mxu0 0.0
  %1138 = vmatpush.msra.mxu0 0.0
  %1139 = vmatpush.msra.mxu0 0.0
  %1140 = vmatpush.msra.mxu0 0.0
  %1141 = vmatpush.msra.mxu0 0.0
  %1142 = vmatpush.msra.mxu0 0.0
  %1143 = vmatpush.msra.mxu0 0.0
  %1144 = vmatpush.msra.mxu0 0.0
  %1145 = vmatpush.msra.mxu0 0.0
  %1146 = vmatpush.msra.mxu0 0.0
  %1147 = vmatpush.msra.mxu0 0.0
  %1148 = vmatpush.msra.mxu0 0.0
  %1149 = vmatpush.msra.mxu0 0.0
  %1150 = vmatpush.msra.mxu0 %v1052
  %1151 = vmatmul.f32.gmra.mxu0 %v1133
  %v1152 = vpop.f32.mrf.mxu0
  %v1153 = vadd.f32 0.0, %v1152
  %1154 = vdwg.mxu0
  %1155 = vrot.lane.b32.xlu0 %v930, 64
  %v1156 = vpop.permute.xlu0 %1155
  %1157 = vrot.lane.b32.xlu0 %v931, 64
  %v1158 = vpop.permute.xlu0 %1157
  %v1162 = vsel %vm64, %v1153, 0
  %1164 = vmatpush.msra.mxu0 0.0
  %1165 = vmatpush.msra.mxu0 0.0
  %1166 = vmatpush.msra.mxu0 0.0
  %1167 = vmatpush.msra.mxu0 0.0
  %1168 = vmatpush.msra.mxu0 0.0
  %1169 = vmatpush.msra.mxu0 0.0
  %1170 = vmatpush.msra.mxu0 0.0
  %1171 = vmatpush.msra.mxu0 0.0
  %1172 = vmatpush.msra.mxu0 0.0
  %1173 = vmatpush.msra.mxu0 0.0
  %1174 = vmatpush.msra.mxu0 0.0
  %1175 = vmatpush.msra.mxu0 0.0
  %1176 = vmatpush.msra.mxu0 0.0
  %1177 = vmatpush.msra.mxu0 0.0
  %1178 = vmatpush.msra.mxu0 %v1158
  %1179 = vmatpush.msra.mxu0 %v1156
  %1180 = vmatmul.f32.gmra.mxu0 %v1162
  %v1181 = vpop.f32.mrf.mxu0
  %v1182 = vadd.f32 0.0, %v1181
  %1183 = vdwg.mxu0
  %v1184 = vadd.f32 %v1129, %v1182
  %1185 = vmatpush.msra.mxu0 0.0
  %1186 = vmatpush.msra.mxu0 0.0
  %1187 = vmatpush.msra.mxu0 0.0
  %1188 = vmatpush.msra.mxu0 0.0
  %1189 = vmatpush.msra.mxu0 0.0
  %1190 = vmatpush.msra.mxu0 0.0
  %1191 = vmatpush.msra.mxu0 0.0
  %1192 = vmatpush.msra.mxu0 0.0
  %1193 = vmatpush.msra.mxu0 0.0
  %1194 = vmatpush.msra.mxu0 0.0
  %1195 = vmatpush.msra.mxu0 0.0
  %1196 = vmatpush.msra.mxu0 0.0
  %1197 = vmatpush.msra.mxu0 0.0
  %1198 = vmatpush.msra.mxu0 0.0
  %1199 = vmatpush.msra.mxu0 0.0
  %1200 = vmatpush.msra.mxu0 %v870
  %1201 = vmatmul.f32.gmra.mxu0 %v908
  %v1202 = vpop.f32.mrf.mxu0
  %v1203 = vadd.f32 0.0, %v1202
  %1204 = vdwg.mxu0
  %1205 = vrot.lane.b32.xlu0 %v21, 64
  %v1206 = vpop.permute.xlu0 %1205
  %v1209 = vsel %vm64, %v1203, 0
  %1211 = vmatpush.msra.mxu0 0.0
  %1212 = vmatpush.msra.mxu0 0.0
  %1213 = vmatpush.msra.mxu0 0.0
  %1214 = vmatpush.msra.mxu0 0.0
  %1215 = vmatpush.msra.mxu0 0.0
  %1216 = vmatpush.msra.mxu0 0.0
  %1217 = vmatpush.msra.mxu0 0.0
  %1218 = vmatpush.msra.mxu0 0.0
  %1219 = vmatpush.msra.mxu0 0.0
  %1220 = vmatpush.msra.mxu0 0.0
  %1221 = vmatpush.msra.mxu0 0.0
  %1222 = vmatpush.msra.mxu0 0.0
  %1223 = vmatpush.msra.mxu0 0.0
  %1224 = vmatpush.msra.mxu0 0.0
  %1225 = vmatpush.msra.mxu0 %v57
  %1226 = vmatpush.msra.mxu0 %v56
  %1227 = vmatmul.f32.gmra.mxu0 %v1209
  %v1228 = vpop.f32.mrf.mxu0
  %v1229 = vadd.f32 %v1206, %v1228
  %1230 = vdwg.mxu0
  %v1231 = vadd.f32 %v1184, %v1229
  %1232 = vrot.lane.b32.xlu0 %v222, 64
  %v1233 = vpop.permute.xlu0 %1232
  %v1235 = vmul.f32 %v1231, %v1233
  %1236 = vrot.lane.b32.xlu0 %v405, 96
  %v1237 = vpop.permute.xlu0 %1236
  %v1239 = vadd.f32 %v1235, %v1237
  %v1240 = vmax.f32 %v1239, 0.0
  %v1242 = vsel %vm1050, %v1240, 0
  %1244 = vmatpush.msra.mxu0 0.0
  %1245 = vmatpush.msra.mxu0 0.0
  %1246 = vmatpush.msra.mxu0 0.0
  %1247 = vmatpush.msra.mxu0 0.0
  %1248 = vmatpush.msra.mxu0 0.0
  %1249 = vmatpush.msra.mxu0 0.0
  %1250 = vmatpush.msra.mxu0 0.0
  %1251 = vmatpush.msra.mxu0 0.0
  %1252 = vmatpush.msra.mxu0 0.0
  %1253 = vmatpush.msra.mxu0 0.0
  %1254 = vmatpush.msra.mxu0 0.0
  %1255 = vmatpush.msra.mxu0 0.0
  %1256 = vmatpush.msra.mxu0 0.0
  %1257 = vmatpush.msra.mxu0 0.0
  %1258 = vmatpush.msra.mxu0 0.0
  %1259 = vmatpush.msra.mxu0 %v1242
  %1260 = vmatmul.f32.gmra.mxu0 %v1048
  %v1261 = vpop.f32.mrf.mxu0
  %v1262 = vadd.f32 0.0, %v1261
  %1263 = vdwg.mxu0
  %1264 = vrot.lane.b32.xlu0 %v930, 32
  %v1265 = vpop.permute.xlu0 %1264
  %1266 = vrot.lane.b32.xlu0 %v931, 32
  %v1267 = vpop.permute.xlu0 %1266
  %v1270 = vsel %vm64, %v1240, 0
  %1272 = vmatpush.msra.mxu0 0.0
  %1273 = vmatpush.msra.mxu0 0.0
  %1274 = vmatpush.msra.mxu0 0.0
  %1275 = vmatpush.msra.mxu0 0.0
  %1276 = vmatpush.msra.mxu0 0.0
  %1277 = vmatpush.msra.mxu0 0.0
  %1278 = vmatpush.msra.mxu0 0.0
  %1279 = vmatpush.msra.mxu0 0.0
  %1280 = vmatpush.msra.mxu0 0.0
  %1281 = vmatpush.msra.mxu0 0.0
  %1282 = vmatpush.msra.mxu0 0.0
  %1283 = vmatpush.msra.mxu0 0.0
  %1284 = vmatpush.msra.mxu0 0.0
  %1285 = vmatpush.msra.mxu0 0.0
  %1286 = vmatpush.msra.mxu0 %v1267
  %1287 = vmatpush.msra.mxu0 %v1265
  %1288 = vmatmul.f32.gmra.mxu0 %v1270
  %v1289 = vpop.f32.mrf.mxu0
  %v1290 = vadd.f32 0.0, %v1289
  %1291 = vdwg.mxu0
  %1292 = vrot.lane.b32.xlu0 %v930, 48
  %v1293 = vpop.permute.xlu0 %1292
  %1294 = vrot.lane.b32.xlu0 %v931, 48
  %v1295 = vpop.permute.xlu0 %1294
  %v1299 = vsel %vm64, %v1262, 0
  %1301 = vmatpush.msra.mxu0 0.0
  %1302 = vmatpush.msra.mxu0 0.0
  %1303 = vmatpush.msra.mxu0 0.0
  %1304 = vmatpush.msra.mxu0 0.0
  %1305 = vmatpush.msra.mxu0 0.0
  %1306 = vmatpush.msra.mxu0 0.0
  %1307 = vmatpush.msra.mxu0 0.0
  %1308 = vmatpush.msra.mxu0 0.0
  %1309 = vmatpush.msra.mxu0 0.0
  %1310 = vmatpush.msra.mxu0 0.0
  %1311 = vmatpush.msra.mxu0 0.0
  %1312 = vmatpush.msra.mxu0 0.0
  %1313 = vmatpush.msra.mxu0 0.0
  %1314 = vmatpush.msra.mxu0 0.0
  %1315 = vmatpush.msra.mxu0 %v1295
  %1316 = vmatpush.msra.mxu0 %v1293
  %1317 = vmatmul.f32.gmra.mxu0 %v1299
  %v1318 = vpop.f32.mrf.mxu0
  %v1319 = vadd.f32 %v1290, %v1318
  %1320 = vdwg.mxu0
  %1321 = vmatpush.msra.mxu0 0.0
  %1322 = vmatpush.msra.mxu0 0.0
  %1323 = vmatpush.msra.mxu0 0.0
  %1324 = vmatpush.msra.mxu0 0.0
  %1325 = vmatpush.msra.mxu0 0.0
  %1326 = vmatpush.msra.mxu0 0.0
  %1327 = vmatpush.msra.mxu0 0.0
  %1328 = vmatpush.msra.mxu0 0.0
  %1329 = vmatpush.msra.mxu0 0.0
  %1330 = vmatpush.msra.mxu0 0.0
  %1331 = vmatpush.msra.mxu0 0.0
  %1332 = vmatpush.msra.mxu0 0.0
  %1333 = vmatpush.msra.mxu0 0.0
  %1334 = vmatpush.msra.mxu0 0.0
  %1335 = vmatpush.msra.mxu0 0.0
  %1336 = vmatpush.msra.mxu0 %v1242
  %1337 = vmatmul.f32.gmra.mxu0 %v1133
  %v1338 = vpop.f32.mrf.mxu0
  %v1339 = vadd.f32 0.0, %v1338
  %1340 = vdwg.mxu0
  %1341 = vrot.lane.b32.xlu0 %v930, 16
  %v1342 = vpop.permute.xlu0 %1341
  %1343 = vrot.lane.b32.xlu0 %v931, 16
  %v1344 = vpop.permute.xlu0 %1343
  %v1348 = vsel %vm64, %v1339, 0
  %1350 = vmatpush.msra.mxu0 0.0
  %1351 = vmatpush.msra.mxu0 0.0
  %1352 = vmatpush.msra.mxu0 0.0
  %1353 = vmatpush.msra.mxu0 0.0
  %1354 = vmatpush.msra.mxu0 0.0
  %1355 = vmatpush.msra.mxu0 0.0
  %1356 = vmatpush.msra.mxu0 0.0
  %1357 = vmatpush.msra.mxu0 0.0
  %1358 = vmatpush.msra.mxu0 0.0
  %1359 = vmatpush.msra.mxu0 0.0
  %1360 = vmatpush.msra.mxu0 0.0
  %1361 = vmatpush.msra.mxu0 0.0
  %1362 = vmatpush.msra.mxu0 0.0
  %1363 = vmatpush.msra.mxu0 0.0
  %1364 = vmatpush.msra.mxu0 %v1344
  %1365 = vmatpush.msra.mxu0 %v1342
  %1366 = vmatmul.f32.gmra.mxu0 %v1348
  %v1367 = vpop.f32.mrf.mxu0
  %v1368 = vadd.f32 0.0, %v1367
  %1369 = vdwg.mxu0
  %v1370 = vadd.f32 %v1319, %v1368
  %v1371 = vadd.f32 %v1370, %v21
  %v1372 = vmax.f32 %v1371, 0.0
  %v1374 = vsel %vm1050, %v1372, 0
  %1376 = vmatpush.msra.mxu0 0.0
  %1377 = vmatpush.msra.mxu0 0.0
  %1378 = vmatpush.msra.mxu0 0.0
  %1379 = vmatpush.msra.mxu0 0.0
  %1380 = vmatpush.msra.mxu0 0.0
  %1381 = vmatpush.msra.mxu0 0.0
  %1382 = vmatpush.msra.mxu0 0.0
  %1383 = vmatpush.msra.mxu0 0.0
  %1384 = vmatpush.msra.mxu0 0.0
  %1385 = vmatpush.msra.mxu0 0.0
  %1386 = vmatpush.msra.mxu0 0.0
  %1387 = vmatpush.msra.mxu0 0.0
  %1388 = vmatpush.msra.mxu0 0.0
  %1389 = vmatpush.msra.mxu0 0.0
  %1390 = vmatpush.msra.mxu0 0.0
  %1391 = vmatpush.msra.mxu0 %v1374
  %1392 = vmatmul.f32.gmra.mxu0 %v1048
  %v1393 = vpop.f32.mrf.mxu0
  %v1394 = vadd.f32 0.0, %v1393
  %1395 = vdwg.mxu0
  %v1396 = vld [vmem:[%s1 + $0x30] sm:$0xff]
  %v1397 = vld [vmem:[%s1 + $0x38] sm:$0xff]
  %1400 = vrot.lane.b32.xlu0 %v1396, 112
  %v1401 = vpop.permute.xlu0 %1400
  %1402 = vrot.lane.b32.xlu0 %v1397, 112
  %v1403 = vpop.permute.xlu0 %1402
  %v1406 = vsel %vm64, %v1372, 0
  %1408 = vmatpush.msra.mxu0 0.0
  %1409 = vmatpush.msra.mxu0 0.0
  %1410 = vmatpush.msra.mxu0 0.0
  %1411 = vmatpush.msra.mxu0 0.0
  %1412 = vmatpush.msra.mxu0 0.0
  %1413 = vmatpush.msra.mxu0 0.0
  %1414 = vmatpush.msra.mxu0 0.0
  %1415 = vmatpush.msra.mxu0 0.0
  %1416 = vmatpush.msra.mxu0 0.0
  %1417 = vmatpush.msra.mxu0 0.0
  %1418 = vmatpush.msra.mxu0 0.0
  %1419 = vmatpush.msra.mxu0 0.0
  %1420 = vmatpush.msra.mxu0 0.0
  %1421 = vmatpush.msra.mxu0 0.0
  %1422 = vmatpush.msra.mxu0 %v1403
  %1423 = vmatpush.msra.mxu0 %v1401
  %1424 = vmatmul.f32.gmra.mxu0 %v1406
  %v1425 = vpop.f32.mrf.mxu0
  %v1426 = vadd.f32 0.0, %v1425
  %1427 = vdwg.mxu0
  %v1429 = vsel %vm64, %v1394, 0
  %1431 = vmatpush.msra.mxu0 0.0
  %1432 = vmatpush.msra.mxu0 0.0
  %1433 = vmatpush.msra.mxu0 0.0
  %1434 = vmatpush.msra.mxu0 0.0
  %1435 = vmatpush.msra.mxu0 0.0
  %1436 = vmatpush.msra.mxu0 0.0
  %1437 = vmatpush.msra.mxu0 0.0
  %1438 = vmatpush.msra.mxu0 0.0
  %1439 = vmatpush.msra.mxu0 0.0
  %1440 = vmatpush.msra.mxu0 0.0
  %1441 = vmatpush.msra.mxu0 0.0
  %1442 = vmatpush.msra.mxu0 0.0
  %1443 = vmatpush.msra.mxu0 0.0
  %1444 = vmatpush.msra.mxu0 0.0
  %1445 = vmatpush.msra.mxu0 %v1397
  %1446 = vmatpush.msra.mxu0 %v1396
  %1447 = vmatmul.f32.gmra.mxu0 %v1429
  %v1448 = vpop.f32.mrf.mxu0
  %v1449 = vadd.f32 %v1426, %v1448
  %1450 = vdwg.mxu0
  %1451 = vmatpush.msra.mxu0 0.0
  %1452 = vmatpush.msra.mxu0 0.0
  %1453 = vmatpush.msra.mxu0 0.0
  %1454 = vmatpush.msra.mxu0 0.0
  %1455 = vmatpush.msra.mxu0 0.0
  %1456 = vmatpush.msra.mxu0 0.0
  %1457 = vmatpush.msra.mxu0 0.0
  %1458 = vmatpush.msra.mxu0 0.0
  %1459 = vmatpush.msra.mxu0 0.0
  %1460 = vmatpush.msra.mxu0 0.0
  %1461 = vmatpush.msra.mxu0 0.0
  %1462 = vmatpush.msra.mxu0 0.0
  %1463 = vmatpush.msra.mxu0 0.0
  %1464 = vmatpush.msra.mxu0 0.0
  %1465 = vmatpush.msra.mxu0 0.0
  %1466 = vmatpush.msra.mxu0 %v1374
  %1467 = vmatmul.f32.gmra.mxu0 %v1133
  %v1468 = vpop.f32.mrf.mxu0
  %v1469 = vadd.f32 0.0, %v1468
  %1470 = vdwg.mxu0
  %1471 = vrot.lane.b32.xlu0 %v1396, 96
  %v1472 = vpop.permute.xlu0 %1471
  %1473 = vrot.lane.b32.xlu0 %v1397, 96
  %v1474 = vpop.permute.xlu0 %1473
  %v1478 = vsel %vm64, %v1469, 0
  %1480 = vmatpush.msra.mxu0 0.0
  %1481 = vmatpush.msra.mxu0 0.0
  %1482 = vmatpush.msra.mxu0 0.0
  %1483 = vmatpush.msra.mxu0 0.0
  %1484 = vmatpush.msra.mxu0 0.0
  %1485 = vmatpush.msra.mxu0 0.0
  %1486 = vmatpush.msra.mxu0 0.0
  %1487 = vmatpush.msra.mxu0 0.0
  %1488 = vmatpush.msra.mxu0 0.0
  %1489 = vmatpush.msra.mxu0 0.0
  %1490 = vmatpush.msra.mxu0 0.0
  %1491 = vmatpush.msra.mxu0 0.0
  %1492 = vmatpush.msra.mxu0 0.0
  %1493 = vmatpush.msra.mxu0 0.0
  %1494 = vmatpush.msra.mxu0 %v1474
  %1495 = vmatpush.msra.mxu0 %v1472
  %1496 = vmatmul.f32.gmra.mxu0 %v1478
  %v1497 = vpop.f32.mrf.mxu0
  %v1498 = vadd.f32 0.0, %v1497
  %1499 = vdwg.mxu0
  %v1500 = vadd.f32 %v1449, %v1498
  %v1501 = vadd.f32 %v1500, %v1231
  %1502 = vrot.lane.b32.xlu0 %v222, 48
  %v1503 = vpop.permute.xlu0 %1502
  %v1505 = vmul.f32 %v1501, %v1503
  %1506 = vrot.lane.b32.xlu0 %v405, 80
  %v1507 = vpop.permute.xlu0 %1506
  %v1509 = vadd.f32 %v1505, %v1507
  %v1510 = vmax.f32 %v1509, 0.0
  %v1511 = vld [vmem:[%s1 + $0x60] sm:$0x3]
  %1513 = vrot.lane.b32.xlu0 %v1511, 32
  %v1514 = vpop.permute.xlu0 %1513
  %v1515 = vsel %vm1047, %v1514, 0
  %v1518 = vsel %vm1050, %v1510, 0
  %1520 = vmatpush.msra.mxu0 0.0
  %1521 = vmatpush.msra.mxu0 0.0
  %1522 = vmatpush.msra.mxu0 0.0
  %1523 = vmatpush.msra.mxu0 0.0
  %1524 = vmatpush.msra.mxu0 0.0
  %1525 = vmatpush.msra.mxu0 0.0
  %1526 = vmatpush.msra.mxu0 0.0
  %1527 = vmatpush.msra.mxu0 0.0
  %1528 = vmatpush.msra.mxu0 0.0
  %1529 = vmatpush.msra.mxu0 0.0
  %1530 = vmatpush.msra.mxu0 0.0
  %1531 = vmatpush.msra.mxu0 0.0
  %1532 = vmatpush.msra.mxu0 0.0
  %1533 = vmatpush.msra.mxu0 0.0
  %1534 = vmatpush.msra.mxu0 0.0
  %1535 = vmatpush.msra.mxu0 %v1518
  %1536 = vmatmul.f32.gmra.mxu0 %v1515
  %v1537 = vpop.f32.mrf.mxu0
  %v1538 = vadd.f32 0.0, %v1537
  %1539 = vdwg.mxu0
  %1540 = vrot.lane.b32.xlu0 %v1511, 16
  %v1541 = vpop.permute.xlu0 %1540
  %v1542 = vsel %vm1047, %v1541, 0
  %1544 = vmatpush.msra.mxu0 0.0
  %1545 = vmatpush.msra.mxu0 0.0
  %1546 = vmatpush.msra.mxu0 0.0
  %1547 = vmatpush.msra.mxu0 0.0
  %1548 = vmatpush.msra.mxu0 0.0
  %1549 = vmatpush.msra.mxu0 0.0
  %1550 = vmatpush.msra.mxu0 0.0
  %1551 = vmatpush.msra.mxu0 0.0
  %1552 = vmatpush.msra.mxu0 0.0
  %1553 = vmatpush.msra.mxu0 0.0
  %1554 = vmatpush.msra.mxu0 0.0
  %1555 = vmatpush.msra.mxu0 0.0
  %1556 = vmatpush.msra.mxu0 0.0
  %1557 = vmatpush.msra.mxu0 0.0
  %1558 = vmatpush.msra.mxu0 0.0
  %1559 = vmatpush.msra.mxu0 %v1518
  %1560 = vmatmul.f32.gmra.mxu0 %v1542
  %v1561 = vpop.f32.mrf.mxu0
  %v1562 = vadd.f32 0.0, %v1561
  %1563 = vdwg.mxu0
  %1564 = vrot.lane.b32.xlu0 %v1396, 48
  %v1565 = vpop.permute.xlu0 %1564
  %1566 = vrot.lane.b32.xlu0 %v1397, 48
  %v1567 = vpop.permute.xlu0 %1566
  %v1571 = vsel %vm64, %v1562, 0
  %1573 = vmatpush.msra.mxu0 0.0
  %1574 = vmatpush.msra.mxu0 0.0
  %1575 = vmatpush.msra.mxu0 0.0
  %1576 = vmatpush.msra.mxu0 0.0
  %1577 = vmatpush.msra.mxu0 0.0
  %1578 = vmatpush.msra.mxu0 0.0
  %1579 = vmatpush.msra.mxu0 0.0
  %1580 = vmatpush.msra.mxu0 0.0
  %1581 = vmatpush.msra.mxu0 0.0
  %1582 = vmatpush.msra.mxu0 0.0
  %1583 = vmatpush.msra.mxu0 0.0
  %1584 = vmatpush.msra.mxu0 0.0
  %1585 = vmatpush.msra.mxu0 0.0
  %1586 = vmatpush.msra.mxu0 0.0
  %1587 = vmatpush.msra.mxu0 %v1567
  %1588 = vmatpush.msra.mxu0 %v1565
  %1589 = vmatmul.f32.gmra.mxu0 %v1571
  %v1590 = vpop.f32.mrf.mxu0
  %v1591 = vadd.f32 0.0, %v1590
  %1592 = vdwg.mxu0
  %1593 = vrot.lane.b32.xlu0 %v1396, 64
  %v1594 = vpop.permute.xlu0 %1593
  %1595 = vrot.lane.b32.xlu0 %v1397, 64
  %v1596 = vpop.permute.xlu0 %1595
  %v1600 = vsel %vm64, %v1538, 0
  %1602 = vmatpush.msra.mxu0 0.0
  %1603 = vmatpush.msra.mxu0 0.0
  %1604 = vmatpush.msra.mxu0 0.0
  %1605 = vmatpush.msra.mxu0 0.0
  %1606 = vmatpush.msra.mxu0 0.0
  %1607 = vmatpush.msra.mxu0 0.0
  %1608 = vmatpush.msra.mxu0 0.0
  %1609 = vmatpush.msra.mxu0 0.0
  %1610 = vmatpush.msra.mxu0 0.0
  %1611 = vmatpush.msra.mxu0 0.0
  %1612 = vmatpush.msra.mxu0 0.0
  %1613 = vmatpush.msra.mxu0 0.0
  %1614 = vmatpush.msra.mxu0 0.0
  %1615 = vmatpush.msra.mxu0 0.0
  %1616 = vmatpush.msra.mxu0 %v1596
  %1617 = vmatpush.msra.mxu0 %v1594
  %1618 = vmatmul.f32.gmra.mxu0 %v1600
  %v1619 = vpop.f32.mrf.mxu0
  %v1620 = vadd.f32 %v1591, %v1619
  %1621 = vdwg.mxu0
  %1622 = vrot.lane.b32.xlu0 %v21, 112
  %v1623 = vpop.permute.xlu0 %1622
  %v1625 = vadd.f32 %v1620, %v1623
  %v1626 = vmax.f32 %v1625, 0.0
  %v1628 = vsel %vm1050, %v1501, 0
  %1630 = vmatpush.msra.mxu0 0.0
  %1631 = vmatpush.msra.mxu0 0.0
  %1632 = vmatpush.msra.mxu0 0.0
  %1633 = vmatpush.msra.mxu0 0.0
  %1634 = vmatpush.msra.mxu0 0.0
  %1635 = vmatpush.msra.mxu0 0.0
  %1636 = vmatpush.msra.mxu0 0.0
  %1637 = vmatpush.msra.mxu0 0.0
  %1638 = vmatpush.msra.mxu0 0.0
  %1639 = vmatpush.msra.mxu0 0.0
  %1640 = vmatpush.msra.mxu0 0.0
  %1641 = vmatpush.msra.mxu0 0.0
  %1642 = vmatpush.msra.mxu0 0.0
  %1643 = vmatpush.msra.mxu0 0.0
  %1644 = vmatpush.msra.mxu0 0.0
  %1645 = vmatpush.msra.mxu0 %v1628
  %1646 = vmatmul.f32.gmra.mxu0 %v1515
  %v1647 = vpop.f32.mrf.mxu0
  %v1648 = vadd.f32 0.0, %v1647
  %1649 = vdwg.mxu0
  %1650 = vrot.lane.b32.xlu0 %v56, 112
  %v1651 = vpop.permute.xlu0 %1650
  %1652 = vrot.lane.b32.xlu0 %v57, 112
  %v1653 = vpop.permute.xlu0 %1652
  %1656 = vrot.lane.b32.xlu0 %v21, 48
  %v1657 = vpop.permute.xlu0 %1656
  %v1660 = vsel %vm64, %v1648, 0
  %1662 = vmatpush.msra.mxu0 0.0
  %1663 = vmatpush.msra.mxu0 0.0
  %1664 = vmatpush.msra.mxu0 0.0
  %1665 = vmatpush.msra.mxu0 0.0
  %1666 = vmatpush.msra.mxu0 0.0
  %1667 = vmatpush.msra.mxu0 0.0
  %1668 = vmatpush.msra.mxu0 0.0
  %1669 = vmatpush.msra.mxu0 0.0
  %1670 = vmatpush.msra.mxu0 0.0
  %1671 = vmatpush.msra.mxu0 0.0
  %1672 = vmatpush.msra.mxu0 0.0
  %1673 = vmatpush.msra.mxu0 0.0
  %1674 = vmatpush.msra.mxu0 0.0
  %1675 = vmatpush.msra.mxu0 0.0
  %1676 = vmatpush.msra.mxu0 %v1653
  %1677 = vmatpush.msra.mxu0 %v1651
  %1678 = vmatmul.f32.gmra.mxu0 %v1660
  %v1679 = vpop.f32.mrf.mxu0
  %v1680 = vadd.f32 %v1657, %v1679
  %1681 = vdwg.mxu0
  %1682 = vrot.lane.b32.xlu0 %v1396, 16
  %v1683 = vpop.permute.xlu0 %1682
  %1684 = vrot.lane.b32.xlu0 %v1397, 16
  %v1685 = vpop.permute.xlu0 %1684
  %v1689 = vsel %vm64, %v1626, 0
  %1691 = vmatpush.msra.mxu0 0.0
  %1692 = vmatpush.msra.mxu0 0.0
  %1693 = vmatpush.msra.mxu0 0.0
  %1694 = vmatpush.msra.mxu0 0.0
  %1695 = vmatpush.msra.mxu0 0.0
  %1696 = vmatpush.msra.mxu0 0.0
  %1697 = vmatpush.msra.mxu0 0.0
  %1698 = vmatpush.msra.mxu0 0.0
  %1699 = vmatpush.msra.mxu0 0.0
  %1700 = vmatpush.msra.mxu0 0.0
  %1701 = vmatpush.msra.mxu0 0.0
  %1702 = vmatpush.msra.mxu0 0.0
  %1703 = vmatpush.msra.mxu0 0.0
  %1704 = vmatpush.msra.mxu0 0.0
  %1705 = vmatpush.msra.mxu0 %v1685
  %1706 = vmatpush.msra.mxu0 %v1683
  %1707 = vmatmul.f32.gmra.mxu0 %v1689
  %v1708 = vpop.f32.mrf.mxu0
  %v1709 = vadd.f32 %v1680, %v1708
  %1710 = vdwg.mxu0
  %1711 = vrot.lane.b32.xlu0 %v222, 32
  %v1712 = vpop.permute.xlu0 %1711
  %v1714 = vmul.f32 %v1709, %v1712
  %1715 = vrot.lane.b32.xlu0 %v405, 64
  %v1716 = vpop.permute.xlu0 %1715
  %v1718 = vadd.f32 %v1714, %v1716
  %v1719 = vmax.f32 %v1718, 0.0
  %1720 = vrot.lane.b32.xlu0 %v564, 96
  %v1721 = vpop.permute.xlu0 %1720
  %1722 = vrot.lane.b32.xlu0 %v565, 96
  %v1723 = vpop.permute.xlu0 %1722
  %1726 = vrot.lane.b32.xlu0 %v21, 96
  %v1727 = vpop.permute.xlu0 %1726
  %v1730 = vsel %vm64, %v1719, 0
  %1732 = vmatpush.msra.mxu0 0.0
  %1733 = vmatpush.msra.mxu0 0.0
  %1734 = vmatpush.msra.mxu0 0.0
  %1735 = vmatpush.msra.mxu0 0.0
  %1736 = vmatpush.msra.mxu0 0.0
  %1737 = vmatpush.msra.mxu0 0.0
  %1738 = vmatpush.msra.mxu0 0.0
  %1739 = vmatpush.msra.mxu0 0.0
  %1740 = vmatpush.msra.mxu0 0.0
  %1741 = vmatpush.msra.mxu0 0.0
  %1742 = vmatpush.msra.mxu0 0.0
  %1743 = vmatpush.msra.mxu0 0.0
  %1744 = vmatpush.msra.mxu0 0.0
  %1745 = vmatpush.msra.mxu0 0.0
  %1746 = vmatpush.msra.mxu0 %v1723
  %1747 = vmatpush.msra.mxu0 %v1721
  %1748 = vmatmul.f32.gmra.mxu0 %v1730
  %v1749 = vpop.f32.mrf.mxu0
  %v1750 = vadd.f32 %v1727, %v1749
  %1751 = vdwg.mxu0
  %v1752 = vmax.f32 %v1750, 0.0
  %1753 = vrot.lane.b32.xlu0 %v564, 48
  %v1754 = vpop.permute.xlu0 %1753
  %1755 = vrot.lane.b32.xlu0 %v565, 48
  %v1756 = vpop.permute.xlu0 %1755
  %v1760 = vsel %vm64, %v1752, 0
  %1762 = vmatpush.msra.mxu0 0.0
  %1763 = vmatpush.msra.mxu0 0.0
  %1764 = vmatpush.msra.mxu0 0.0
  %1765 = vmatpush.msra.mxu0 0.0
  %1766 = vmatpush.msra.mxu0 0.0
  %1767 = vmatpush.msra.mxu0 0.0
  %1768 = vmatpush.msra.mxu0 0.0
  %1769 = vmatpush.msra.mxu0 0.0
  %1770 = vmatpush.msra.mxu0 0.0
  %1771 = vmatpush.msra.mxu0 0.0
  %1772 = vmatpush.msra.mxu0 0.0
  %1773 = vmatpush.msra.mxu0 0.0
  %1774 = vmatpush.msra.mxu0 0.0
  %1775 = vmatpush.msra.mxu0 0.0
  %1776 = vmatpush.msra.mxu0 %v1756
  %1777 = vmatpush.msra.mxu0 %v1754
  %1778 = vmatmul.f32.gmra.mxu0 %v1760
  %v1779 = vpop.f32.mrf.mxu0
  %v1780 = vadd.f32 %v1709, %v1779
  %1781 = vdwg.mxu0
  %1782 = vrot.lane.b32.xlu0 %v21, 16
  %v1783 = vpop.permute.xlu0 %1782
  %v1785 = vmul.f32 %v1780, %v1783
  %vm1786 = vcmask 123904
  %v1787 = vsel %vm1786, %v1785, 0.0
  %1788 = vadd.xlane.f32.xlu0 %v1787
  %v1789 = vpop.xlane.xlu0 %1788
  %v1790 = vld [vmem:[%s2 + $0x3] sm:$0x1]
  %v1791 = vperm.slane %v1790, 0
  %v1792 = vadd.f32 %v1789, %v1791
  %vm1793 = vcmask 1024
  %1794 = vst.msk [vmem:[%s3] sm:$0x3] %vm1793, %v1792
  // Predicated region
  $region14: #{choose_model_forward.1} parent=0 // pred_check
    _
  $region15: #{choose_model_forward.1} parent=0 // pred_check_branch
    %1796 = sbr.rel (0) target = $region17
  $region16: #{choose_model_forward.1} parent=0 // pred_region
    _
  $region17: #{choose_model_forward.1} parent=0 // pred_fallthru
    _
  // Predicated region
  $region18: #{choose_model_forward.1} parent=0 // pred_check
    _
  $region19: #{choose_model_forward.1} parent=0 // pred_check_branch
    %1798 = sbr.rel (0) target = $region21
  $region20: #{choose_model_forward.1} parent=0 // pred_region
    _
  $region21: #{choose_model_forward.1} parent=0 // pred_fallthru
    _

</llo_original>
